<compile_context>
chip_gen: v7x
topology: tpu7x:2x2x1
jax: 0.10.0
libtpu: 0.0.40
codegen_flags: <defaults>
</compile_context>

<pallas_src>
import jax
import jax.numpy as jnp
from jax.experimental import pallas as pl
from jax.experimental.pallas import tpu as pltpu


def _round_up(x, m):
    return ((x + m - 1) // m) * m


def _lane_bytes(rows, cols, itemsize):
    # Approximate VMEM footprint of a 2-D tile ((8,128) layout padding).
    return _round_up(max(rows, 1), 8) * _round_up(max(cols, 1), 128) * itemsize


def _vmem_limit(block_bytes, scratch_bytes):
    # double-buffered pipeline copies of the blocks + in-kernel intermediates,
    # with headroom; clamped so we never over-reserve v7x's 64 MiB VMEM.
    need = 2 * block_bytes + scratch_bytes
    return int(min(max(int(1.5 * need) + (6 << 20), 16 << 20), 48 << 20))


# --------------------------------------------------------------------------- #
# Pallas kernel 1: encoder 3x3 conv (padding=1) as a single K=9*Cin matmul on
# wrapper-built im2col patches (bf16), row-tiled over (B, H/tile_h).
# --------------------------------------------------------------------------- #
def _conv_kernel(p_ref, w_ref, b_ref, o_ref):
    # p_ref: (1, TH, W, 9*Cin) bf16   w_ref: (9*Cin, Cf) bf16   b_ref: (1, Cf) f32
    # o_ref: (1, TH, W, Cf) bf16
    th, w, k = p_ref.shape[1], p_ref.shape[2], p_ref.shape[3]
    cf = w_ref.shape[1]
    patches = p_ref[0].reshape(th * w, k)            # free merge of non-lane dims
    acc = jnp.dot(patches, w_ref[...], preferred_element_type=jnp.float32)
    acc = acc + b_ref[...]
    o_ref[0] = acc.astype(o_ref.dtype).reshape(th, w, cf)


def _pick_tile_h(h, w):
    # keep the patch block a few MiB; tile_h must divide H and be a multiple of
    # 8 (or equal H) so the output block satisfies the (8,128) rule.
    cap = max(8, 8192 // max(w, 1))
    if h <= cap:
        return h
    best = None
    for t in range(8, cap + 1, 8):
        if h % t == 0:
            best = t
    return best if best is not None else h


def conv3x3_pallas(patches, wmat, bvec):
    b, h, w, k = patches.shape
    cf = wmat.shape[1]
    tile_h = _pick_tile_h(h, w)
    block_bytes = (_lane_bytes(tile_h * w, k, 2) + _lane_bytes(k, cf, 2)
                   + _lane_bytes(1, cf, 4) + _lane_bytes(tile_h * w, cf, 2))
    scratch_bytes = _lane_bytes(tile_h * w, cf, 4)   # f32 accumulator
    return pl.pallas_call(
        _conv_kernel,
        out_shape=jax.ShapeDtypeStruct((b, h, w, cf), jnp.bfloat16),
        grid_spec=pltpu.PrefetchScalarGridSpec(
            num_scalar_prefetch=0,
            grid=(b, h // tile_h),
            in_specs=[
                pl.BlockSpec((1, tile_h, w, k), lambda bi, hi: (bi, hi, 0, 0)),
                pl.BlockSpec((k, cf), lambda bi, hi: (0, 0)),
                pl.BlockSpec((1, cf), lambda bi, hi: (0, 0)),
            ],
            out_specs=pl.BlockSpec((1, tile_h, w, cf), lambda bi, hi: (bi, hi, 0, 0)),
        ),
        compiler_params=pltpu.CompilerParams(
            dimension_semantics=("parallel", "parallel"),
            vmem_limit_bytes=_vmem_limit(block_bytes, scratch_bytes),
        ),
    )(patches, wmat, bvec)


# --------------------------------------------------------------------------- #
# Pallas kernel 2: imnet MLP (3 -> 256 -> 9C*3) + per-query bmm contraction.
# First layer = 3 VPU broadcast FMAs; output layer = ONE fused MXU matmul with
# N = 3*K9p; the per-RGB reductions use 128-aligned static lane slices.
# --------------------------------------------------------------------------- #
def _query_kernel(x_ref, qf_ref, w1_ref, b1_ref, w2_ref, b2_ref, o_ref):
    x = x_ref[...]                                   # (TQ, 3)   f32
    w1 = w1_ref[...]                                 # (3, HID)  f32
    h = (b1_ref[...]
         + x[:, 0:1] * w1[0:1, :]
         + x[:, 1:2] * w1[1:2, :]
         + x[:, 2:3] * w1[2:3, :])
    h = jnp.maximum(h, 0.0).astype(jnp.bfloat16)     # (TQ, HID) ReLU, bf16 for MXU
    # fused output layer across all 3 RGB column groups (fills the 256-wide MXU)
    pred = jnp.dot(h, w2_ref[...], preferred_element_type=jnp.float32) + b2_ref[...]
    qf = qf_ref[...].astype(jnp.float32)             # (TQ, K9)  unfolded features
    k9 = qf.shape[1]
    k9p = b2_ref.shape[1] // 3
    cols = []
    for j in range(3):                               # static unroll over RGB
        pj = pred[:, j * k9p: j * k9p + k9]          # 128-aligned start, K9 wide
        # torch.bmm(q_feat.view(N,1,9C), pred.view(N,9C,3))[:, 0, j]
        cols.append(jnp.sum(qf * pj, axis=1, keepdims=True))
    # (TQ, 3) output kept: 12 B/query store stream is negligible vs. q_feat.
    o_ref[...] = jnp.concatenate(cols, axis=1).astype(o_ref.dtype)


def query_rgb_pallas(mlp_in, q_feat, w1, b1, w2cat, b2cat, *, tile_q):
    n, k9 = q_feat.shape
    hid = w1.shape[1]
    n3k = w2cat.shape[1]
    assert n % tile_q == 0, "wrapper must pad the flattened query axis"
    block_bytes = (_lane_bytes(tile_q, 3, 4) + _lane_bytes(tile_q, k9, 2)
                   + _lane_bytes(3, hid, 4) + _lane_bytes(1, hid, 4)
                   + _lane_bytes(hid, n3k, 2) + _lane_bytes(1, n3k, 4)
                   + _lane_bytes(tile_q, 3, 4))
    scratch_bytes = (_lane_bytes(tile_q, n3k, 4)     # pred (f32)
                     + _lane_bytes(tile_q, hid, 4) + _lane_bytes(tile_q, hid, 2)
                     + _lane_bytes(tile_q, k9, 4))   # qf upcast
    return pl.pallas_call(
        _query_kernel,
        out_shape=jax.ShapeDtypeStruct((n, 3), jnp.float32),
        grid_spec=pltpu.PrefetchScalarGridSpec(
            num_scalar_prefetch=0,
            grid=(n // tile_q,),
            in_specs=[
                pl.BlockSpec((tile_q, 3), lambda i: (i, 0)),
                pl.BlockSpec((tile_q, k9), lambda i: (i, 0)),
                pl.BlockSpec((3, hid), lambda i: (0, 0)),
                pl.BlockSpec((1, hid), lambda i: (0, 0)),
                pl.BlockSpec((hid, n3k), lambda i: (0, 0)),
                pl.BlockSpec((1, n3k), lambda i: (0, 0)),
            ],
            out_specs=pl.BlockSpec((tile_q, 3), lambda i: (i, 0)),
        ),
        compiler_params=pltpu.CompilerParams(
            dimension_semantics=("parallel",),
            vmem_limit_bytes=_vmem_limit(block_bytes, scratch_bytes),
        ),
    )(mlp_in, q_feat, w1, b1, w2cat, b2cat)


# --------------------------------------------------------------------------- #
# Parameter prep: conv weight as a (9*Cin, Cf) im2col matrix; imnet output
# layer split by RGB column, each segment zero-padded to a 128 multiple and
# concatenated to a single (HID, 3*K9p) bf16 matrix.
# --------------------------------------------------------------------------- #
def prepare_params(wc, bc, w1, b1, w2, b2):
    cin, cf = wc.shape[1], wc.shape[2]
    k9 = 9 * cf
    k9p = _round_up(k9, 128)
    wcmat = wc.reshape(9 * cin, cf).astype(jnp.bfloat16)            # rows: t*Cin+c
    w2cols, b2cols = [], []
    for j in range(3):                                              # torch col k*3+j
        w2cols.append(jnp.pad(w2[:, j::3], ((0, 0), (0, k9p - k9))))
        b2cols.append(jnp.pad(b2[j::3], (0, k9p - k9)))
    w2cat = jnp.concatenate(w2cols, axis=1).astype(jnp.bfloat16)    # (HID, 3*K9p)
    b2cat = jnp.concatenate(b2cols, axis=0).reshape(1, 3 * k9p).astype(jnp.float32)
    return {
        "wcmat": wcmat, "bc": bc.astype(jnp.float32),
        "w1": w1.astype(jnp.float32), "b1": b1.astype(jnp.float32),
        "w2cat": w2cat, "b2cat": b2cat,
        "cin": cin, "cf": cf, "k9": k9, "k9p": k9p,
    }


# --------------------------------------------------------------------------- #
# Full MetaSR forward (glue in plain JAX, hot paths in Pallas)
# --------------------------------------------------------------------------- #
def metasr_forward(params, inp, coord, cell, *, tile_q=1024, use_pallas=True):
    b, cin, h, w = inp.shape
    q = coord.shape[1]
    cf, k9, k9p = params["cf"], params["k9"], params["k9p"]
    tile_q = max(128, _round_up(tile_q, 128))

    # ---- encoder: 3x3 conv, padding=1 ---------------------------------------
    x = jnp.transpose(inp, (0, 2, 3, 1))                           # NHWC f32
    xp = jnp.pad(x, ((0, 0), (1, 1), (1, 1), (0, 0)))
    # im2col at *input* resolution only (9*Cin bf16 per input pixel) -> one
    # K=9*Cin MXU matmul in the kernel; the heavy per-query stream is elsewhere.
    patches = jnp.concatenate(
        [xp[:, dy:dy + h, dx:dx + w, :] for dy in range(3) for dx in range(3)],
        axis=-1).astype(jnp.bfloat16)                              # (B,H,W,9*Cin)
    if use_pallas:
        feat = conv3x3_pallas(patches, params["wcmat"], params["bc"])
    else:
        acc = jnp.dot(patches.reshape(-1, 9 * cin), params["wcmat"],
                      preferred_element_type=jnp.float32) + params["bc"]
        feat = acc.astype(jnp.bfloat16).reshape(b, h, w, cf)

    # ---- query_rgb: coordinate math + nearest grid_sample indices -----------
    coord_ = coord - cell / 2.0
    coord_q = jnp.clip(coord_ + 1e-6, -1.0 + 1e-6, 1.0 - 1e-6)
    # grid_sample(mode='nearest', align_corners=False): unnormalize + round
    # (jnp.round = round-half-to-even, same as torch's nearbyint)
    iy = jnp.clip(jnp.round(((coord_q[..., 0] + 1.0) * h - 1.0) / 2.0),
                  0, h - 1).astype(jnp.int32)
    ix = jnp.clip(jnp.round(((coord_q[..., 1] + 1.0) * w - 1.0) / 2.0),
                  0, w - 1).astype(jnp.int32)
    # feat_coord after the "-2/n/2" shift equals exactly (-1 + 2*i/n)
    q_coord = jnp.stack([-1.0 + 2.0 * iy.astype(jnp.float32) / h,
                         -1.0 + 2.0 * ix.astype(jnp.float32) / w], axis=-1)
    rel_coord = (coord_ - q_coord) * jnp.array([h / 2.0, w / 2.0], jnp.float32)
    r_rev = cell[..., 0:1] * (h / 2.0)
    mlp_in = jnp.concatenate([rel_coord, r_rev], axis=-1)          # (B, Q, 3) f32

    # ---- F.unfold(feat, 3, padding=1) sampled at the nearest pixel ----------
    # channel order c*9 + (dy*3+dx); stream kept at exactly N*9*Cf bf16.
    fp = jnp.pad(feat, ((0, 0), (1, 1), (1, 1), (0, 0)))           # bf16
    bidx = jnp.arange(b)[:, None]
    nbrs = [fp[bidx, iy + dy, ix + dx, :] for dy in range(3) for dx in range(3)]
    q_feat = jnp.stack(nbrs, axis=-1).reshape(b, q, k9)            # (B,Q,9C) bf16

    # ---- pad the *flattened* query axis once (tiny coords + qf tail only) ---
    n0 = b * q
    tq = min(tile_q, max(128, _round_up(n0, 128)))
    n = _round_up(n0, tq)
    mlp_flat = jnp.pad(mlp_in.reshape(n0, 3), ((0, n - n0), (0, 0)))
    qf_flat = jnp.pad(q_feat.reshape(n0, k9), ((0, n - n0), (0, 0)))

    # ---- imnet MLP + bmm contraction ----------------------------------------
    if use_pallas:
        out = query_rgb_pallas(mlp_flat, qf_flat, params["w1"], params["b1"],
                               params["w2cat"], params["b2cat"], tile_q=tq)
    else:
        w1 = params["w1"]
        hh = (params["b1"] + mlp_flat[:, 0:1] * w1[0:1, :]
              + mlp_flat[:, 1:2] * w1[1:2, :] + mlp_flat[:, 2:3] * w1[2:3, :])
        hh = jnp.maximum(hh, 0.0).astype(jnp.bfloat16)
        pred = (jnp.dot(hh, params["w2cat"], preferred_element_type=jnp.float32)
                + params["b2cat"])
        qf = qf_flat.astype(jnp.float32)
        cols = [jnp.sum(qf * pred[:, j * k9p: j * k9p + k9], axis=1, keepdims=True)
                for j in range(3)]
        out = jnp.concatenate(cols, axis=1)
    return out[:n0].reshape(b, q, 3)


if __name__ == "__main__":
    B, Cin, H, W = 2, 3, 16, 16
    Cf, Q, HID = 8, 64, 256

    key = jax.random.PRNGKey(0)
    ks = jax.random.split(key, 8)
    inp = jax.random.normal(ks[0], (B, Cin, H, W), jnp.float32)
    coord = jax.random.uniform(ks[1], (B, Q, 2), jnp.float32, minval=-1.0, maxval=1.0)
    cell = jnp.full((B, Q, 2), 2.0 / 32.0, jnp.float32)   # as if rendering 32x32

    # deterministic synthetic parameters (shapes per MetaSR.__init__)
    wc = 0.1 * jax.random.normal(ks[2], (9, Cin, Cf), jnp.float32)   # 3x3 conv, tap-major
    bc = 0.01 * jax.random.normal(ks[3], (1, Cf), jnp.float32)
    w1 = 0.2 * jax.random.normal(ks[4], (3, HID), jnp.float32)       # imnet layer 1
    b1 = 0.01 * jax.random.normal(ks[5], (1, HID), jnp.float32)
    w2 = 0.05 * jax.random.normal(ks[6], (HID, Cf * 9 * 3), jnp.float32)
    b2 = 0.01 * jax.random.normal(ks[7], (Cf * 9 * 3,), jnp.float32)
    params = prepare_params(wc, bc, w1, b1, w2, b2)

    fwd = jax.jit(lambda i, c, s: metasr_forward(params, i, c, s, use_pallas=True))
    out = jax.block_until_ready(fwd(inp, coord, cell))

    ref = metasr_forward(params, inp, coord, cell, use_pallas=False)
    assert out.shape == (B, Q, 3)
    err = float(jnp.max(jnp.abs(out - ref)))
    # bf16 matmul inputs (f32 accumulation) in both paths; tolerance covers
    # MXU-vs-XLA accumulation-order differences.
    assert err < 1e-2, f"mismatch vs jnp reference: {err}"
    print("KERNEL_OK")
</pallas_src>

<mosaic_0001>
module attributes {stable_mosaic.version = 11 : i64} {
  func.func @_conv_kernel(%arg0: i32, %arg1: i32, %arg2: memref<1x16x16x27xbf16, #tpu.memory_space<vmem>>, %arg3: memref<27x8xbf16, #tpu.memory_space<vmem>>, %arg4: memref<1x8xf32, #tpu.memory_space<vmem>>, %arg5: memref<1x16x16x8xbf16, #tpu.memory_space<vmem>>) attributes {dimension_semantics = [#tpu.dimension_semantics<parallel>, #tpu.dimension_semantics<parallel>], iteration_bounds = array<i64: 2, 1>, scalar_prefetch = 0 : i64, scratch_operands = 0 : i64, tpu.core_type = #tpu.core_type<tc>, window_params = [{transform_indices = @transform_0, window_bounds = array<i64: 1, 16, 16, 27>}, {pipeline_mode = #tpu.pipeline_mode<synchronous>, transform_indices = @transform_1, window_bounds = array<i64: 27, 8>}, {pipeline_mode = #tpu.pipeline_mode<synchronous>, transform_indices = @transform_2, window_bounds = array<i64: 1, 8>}, {transform_indices = @transform_3, window_bounds = array<i64: 1, 16, 16, 8>}]} {
    %c0 = arith.constant 0 : index
    %c0_0 = arith.constant 0 : index
    %c0_1 = arith.constant 0 : index
    %c0_2 = arith.constant 0 : index
    %0 = vector.load %arg2[%c0, %c0_0, %c0_1, %c0_2] : memref<1x16x16x27xbf16, #tpu.memory_space<vmem>>, vector<1x16x16x27xbf16>
    %1 = vector.shape_cast %0 : vector<1x16x16x27xbf16> to vector<16x16x27xbf16>
    %2 = vector.shape_cast %1 : vector<16x16x27xbf16> to vector<256x27xbf16>
    %c0_3 = arith.constant 0 : index
    %c0_4 = arith.constant 0 : index
    %3 = vector.load %arg3[%c0_3, %c0_4] : memref<27x8xbf16, #tpu.memory_space<vmem>>, vector<27x8xbf16>
    %cst = arith.constant dense<0.000000e+00> : vector<256x8xf32>
    %4 = tpu.matmul %2, %3, %cst {dimension_numbers = #tpu.dot_dimension_numbers<[1], [0], [0], [1], [0, 0, 1, 1], [], []>} : vector<256x27xbf16>, vector<27x8xbf16>, vector<256x8xf32> -> vector<256x8xf32>
    %c0_5 = arith.constant 0 : index
    %c0_6 = arith.constant 0 : index
    %5 = vector.load %arg4[%c0_5, %c0_6] : memref<1x8xf32, #tpu.memory_space<vmem>>, vector<1x8xf32>
    %6 = vector.broadcast %5 : vector<1x8xf32> to vector<256x8xf32>
    %7 = arith.addf %4, %6 : vector<256x8xf32>
    %8 = arith.truncf %7 : vector<256x8xf32> to vector<256x8xbf16>
    %9 = vector.shape_cast %8 : vector<256x8xbf16> to vector<16x16x8xbf16>
    %c0_7 = arith.constant 0 : index
    %c0_8 = arith.constant 0 : index
    %c0_9 = arith.constant 0 : index
    %c0_10 = arith.constant 0 : index
    %10 = vector.load %arg5[%c0_7, %c0_8, %c0_9, %c0_10] : memref<1x16x16x8xbf16, #tpu.memory_space<vmem>>, vector<1x16x16x8xbf16>
    %11 = vector.shape_cast %10 : vector<1x16x16x8xbf16> to vector<16x16x8xbf16>
    %12 = vector.shape_cast %9 : vector<16x16x8xbf16> to vector<1x16x16x8xbf16>
    tpu.vector_store %arg5[%c0_7, %c0_8, %c0_9, %c0_10], %12 {strides = array<i32>} : memref<1x16x16x8xbf16, #tpu.memory_space<vmem>>, vector<1x16x16x8xbf16>,
    return
  }
  func.func @transform_0(%arg0: i32, %arg1: i32) -> (i32, i32, i32, i32) {
    %c0_i32 = arith.constant 0 : i32
    %c0_i32_0 = arith.constant 0 : i32
    %c0_i32_1 = arith.constant 0 : i32
    return %arg0, %arg1, %c0_i32, %c0_i32_0 : i32, i32, i32, i32
  }
  func.func @transform_1(%arg0: i32, %arg1: i32) -> (i32, i32) {
    %c0_i32 = arith.constant 0 : i32
    %c0_i32_0 = arith.constant 0 : i32
    %c0_i32_1 = arith.constant 0 : i32
    return %c0_i32, %c0_i32_0 : i32, i32
  }
  func.func @transform_2(%arg0: i32, %arg1: i32) -> (i32, i32) {
    %c0_i32 = arith.constant 0 : i32
    %c0_i32_0 = arith.constant 0 : i32
    %c0_i32_1 = arith.constant 0 : i32
    return %c0_i32, %c0_i32_0 : i32, i32
  }
  func.func @transform_3(%arg0: i32, %arg1: i32) -> (i32, i32, i32, i32) {
    %c0_i32 = arith.constant 0 : i32
    %c0_i32_0 = arith.constant 0 : i32
    %c0_i32_1 = arith.constant 0 : i32
    return %arg0, %arg1, %c0_i32, %c0_i32_0 : i32, i32, i32, i32
  }
}

module attributes {stable_mosaic.version = 11 : i64} {
  func.func @_query_kernel(%arg0: i32, %arg1: memref<128x3xf32, #tpu.memory_space<vmem>>, %arg2: memref<128x72xbf16, #tpu.memory_space<vmem>>, %arg3: memref<3x256xf32, #tpu.memory_space<vmem>>, %arg4: memref<1x256xf32, #tpu.memory_space<vmem>>, %arg5: memref<256x384xbf16, #tpu.memory_space<vmem>>, %arg6: memref<1x384xf32, #tpu.memory_space<vmem>>, %arg7: memref<128x3xf32, #tpu.memory_space<vmem>>) attributes {dimension_semantics = [#tpu.dimension_semantics<parallel>], iteration_bounds = array<i64: 1>, scalar_prefetch = 0 : i64, scratch_operands = 0 : i64, tpu.core_type = #tpu.core_type<tc>, window_params = [{transform_indices = @transform_0, window_bounds = array<i64: 128, 3>}, {transform_indices = @transform_1, window_bounds = array<i64: 128, 72>}, {pipeline_mode = #tpu.pipeline_mode<synchronous>, transform_indices = @transform_2, window_bounds = array<i64: 3, 256>}, {pipeline_mode = #tpu.pipeline_mode<synchronous>, transform_indices = @transform_3, window_bounds = array<i64: 1, 256>}, {pipeline_mode = #tpu.pipeline_mode<synchronous>, transform_indices = @transform_4, window_bounds = array<i64: 256, 384>}, {pipeline_mode = #tpu.pipeline_mode<synchronous>, transform_indices = @transform_5, window_bounds = array<i64: 1, 384>}, {transform_indices = @transform_6, window_bounds = array<i64: 128, 3>}]} {
    %c0 = arith.constant 0 : index
    %c0_0 = arith.constant 0 : index
    %0 = vector.load %arg1[%c0, %c0_0] : memref<128x3xf32, #tpu.memory_space<vmem>>, vector<128x3xf32>
    %c0_1 = arith.constant 0 : index
    %c0_2 = arith.constant 0 : index
    %1 = vector.load %arg3[%c0_1, %c0_2] : memref<3x256xf32, #tpu.memory_space<vmem>>, vector<3x256xf32>
    %c0_3 = arith.constant 0 : index
    %c0_4 = arith.constant 0 : index
    %2 = vector.load %arg4[%c0_3, %c0_4] : memref<1x256xf32, #tpu.memory_space<vmem>>, vector<1x256xf32>
    %3 = vector.extract_strided_slice %0 {offsets = [0, 0], sizes = [128, 1], strides = [1, 1]} : vector<128x3xf32> to vector<128x1xf32>
    %4 = vector.extract_strided_slice %1 {offsets = [0, 0], sizes = [1, 256], strides = [1, 1]} : vector<3x256xf32> to vector<1x256xf32>
    %5 = vector.broadcast %3 : vector<128x1xf32> to vector<128x256xf32>
    %6 = vector.broadcast %4 : vector<1x256xf32> to vector<128x256xf32>
    %7 = arith.mulf %5, %6 : vector<128x256xf32>
    %8 = vector.broadcast %2 : vector<1x256xf32> to vector<128x256xf32>
    %9 = arith.addf %8, %7 : vector<128x256xf32>
    %10 = vector.extract_strided_slice %0 {offsets = [0, 1], sizes = [128, 1], strides = [1, 1]} : vector<128x3xf32> to vector<128x1xf32>
    %11 = vector.extract_strided_slice %1 {offsets = [1, 0], sizes = [1, 256], strides = [1, 1]} : vector<3x256xf32> to vector<1x256xf32>
    %12 = vector.broadcast %10 : vector<128x1xf32> to vector<128x256xf32>
    %13 = vector.broadcast %11 : vector<1x256xf32> to vector<128x256xf32>
    %14 = arith.mulf %12, %13 : vector<128x256xf32>
    %15 = arith.addf %9, %14 : vector<128x256xf32>
    %16 = vector.extract_strided_slice %0 {offsets = [0, 2], sizes = [128, 1], strides = [1, 1]} : vector<128x3xf32> to vector<128x1xf32>
    %17 = vector.extract_strided_slice %1 {offsets = [2, 0], sizes = [1, 256], strides = [1, 1]} : vector<3x256xf32> to vector<1x256xf32>
    %18 = vector.broadcast %16 : vector<128x1xf32> to vector<128x256xf32>
    %19 = vector.broadcast %17 : vector<1x256xf32> to vector<128x256xf32>
    %20 = arith.mulf %18, %19 : vector<128x256xf32>
    %21 = arith.addf %15, %20 : vector<128x256xf32>
    %cst = arith.constant 0.000000e+00 : f32
    %22 = vector.broadcast %cst : f32 to vector<128x256xf32>
    %23 = arith.maximumf %21, %22 : vector<128x256xf32>
    %24 = arith.truncf %23 : vector<128x256xf32> to vector<128x256xbf16>
    %c0_5 = arith.constant 0 : index
    %c0_6 = arith.constant 0 : index
    %25 = vector.load %arg5[%c0_5, %c0_6] : memref<256x384xbf16, #tpu.memory_space<vmem>>, vector<256x384xbf16>
    %cst_7 = arith.constant dense<0.000000e+00> : vector<128x384xf32>
    %26 = tpu.matmul %24, %25, %cst_7 {dimension_numbers = #tpu.dot_dimension_numbers<[1], [0], [0], [1], [0, 0, 1, 1], [], []>} : vector<128x256xbf16>, vector<256x384xbf16>, vector<128x384xf32> -> vector<128x384xf32>
    %c0_8 = arith.constant 0 : index
    %c0_9 = arith.constant 0 : index
    %27 = vector.load %arg6[%c0_8, %c0_9] : memref<1x384xf32, #tpu.memory_space<vmem>>, vector<1x384xf32>
    %28 = vector.broadcast %27 : vector<1x384xf32> to vector<128x384xf32>
    %29 = arith.addf %26, %28 : vector<128x384xf32>
    %c0_10 = arith.constant 0 : index
    %c0_11 = arith.constant 0 : index
    %30 = vector.load %arg2[%c0_10, %c0_11] : memref<128x72xbf16, #tpu.memory_space<vmem>>, vector<128x72xbf16>
    %31 = arith.extf %30 : vector<128x72xbf16> to vector<128x72xf32>
    %32 = vector.extract_strided_slice %29 {offsets = [0, 0], sizes = [128, 72], strides = [1, 1]} : vector<128x384xf32> to vector<128x72xf32>
    %33 = arith.mulf %31, %32 : vector<128x72xf32>
    %cst_12 = arith.constant dense<0.000000e+00> : vector<128xf32>
    %34 = vector.multi_reduction <add>, %33, %cst_12 [1] : vector<128x72xf32> to vector<128xf32>
    %35 = vector.shape_cast %34 : vector<128xf32> to vector<128x1xf32>
    %36 = vector.extract_strided_slice %29 {offsets = [0, 128], sizes = [128, 72], strides = [1, 1]} : vector<128x384xf32> to vector<128x72xf32>
    %37 = arith.mulf %31, %36 : vector<128x72xf32>
    %cst_13 = arith.constant dense<0.000000e+00> : vector<128xf32>
    %38 = vector.multi_reduction <add>, %37, %cst_13 [1] : vector<128x72xf32> to vector<128xf32>
    %39 = vector.shape_cast %38 : vector<128xf32> to vector<128x1xf32>
    %40 = vector.extract_strided_slice %29 {offsets = [0, 256], sizes = [128, 72], strides = [1, 1]} : vector<128x384xf32> to vector<128x72xf32>
    %41 = arith.mulf %31, %40 : vector<128x72xf32>
    %cst_14 = arith.constant dense<0.000000e+00> : vector<128xf32>
    %42 = vector.multi_reduction <add>, %41, %cst_14 [1] : vector<128x72xf32> to vector<128xf32>
    %43 = vector.shape_cast %42 : vector<128xf32> to vector<128x1xf32>
    %44 = tpu.concatenate %35, %39, %43 in 1 : vector<128x1xf32>, vector<128x1xf32>, vector<128x1xf32> -> vector<128x3xf32>
    %c0_15 = arith.constant 0 : index
    %c0_16 = arith.constant 0 : index
    %45 = vector.load %arg7[%c0_15, %c0_16] : memref<128x3xf32, #tpu.memory_space<vmem>>, vector<128x3xf32>
    tpu.vector_store %arg7[%c0_15, %c0_16], %44 {strides = array<i32>} : memref<128x3xf32, #tpu.memory_space<vmem>>, vector<128x3xf32>,
    return
  }
  func.func @transform_0(%arg0: i32) -> (i32, i32) {
    %c0_i32 = arith.constant 0 : i32
    %c0_i32_0 = arith.constant 0 : i32
    return %arg0, %c0_i32 : i32, i32
  }
  func.func @transform_1(%arg0: i32) -> (i32, i32) {
    %c0_i32 = arith.constant 0 : i32
    %c0_i32_0 = arith.constant 0 : i32
    return %arg0, %c0_i32 : i32, i32
  }
  func.func @transform_2(%arg0: i32) -> (i32, i32) {
    %c0_i32 = arith.constant 0 : i32
    %c0_i32_0 = arith.constant 0 : i32
    %c0_i32_1 = arith.constant 0 : i32
    return %c0_i32, %c0_i32_0 : i32, i32
  }
  func.func @transform_3(%arg0: i32) -> (i32, i32) {
    %c0_i32 = arith.constant 0 : i32
    %c0_i32_0 = arith.constant 0 : i32
    %c0_i32_1 = arith.constant 0 : i32
    return %c0_i32, %c0_i32_0 : i32, i32
  }
  func.func @transform_4(%arg0: i32) -> (i32, i32) {
    %c0_i32 = arith.constant 0 : i32
    %c0_i32_0 = arith.constant 0 : i32
    %c0_i32_1 = arith.constant 0 : i32
    return %c0_i32, %c0_i32_0 : i32, i32
  }
  func.func @transform_5(%arg0: i32) -> (i32, i32) {
    %c0_i32 = arith.constant 0 : i32
    %c0_i32_0 = arith.constant 0 : i32
    %c0_i32_1 = arith.constant 0 : i32
    return %c0_i32, %c0_i32_0 : i32, i32
  }
  func.func @transform_6(%arg0: i32) -> (i32, i32) {
    %c0_i32 = arith.constant 0 : i32
    %c0_i32_0 = arith.constant 0 : i32
    return %arg0, %c0_i32 : i32, i32
  }
}

</mosaic_0001>

<llo_original>
// kernel: _lambda_.2
$region0: #{_lambda_.2}
  #allocation0 [shape = 'u32[]', space=smem, size = 0x4, offset = 0x4, fixed_abs, tag = 'smem constant byte address 0x4 - core index']
  #allocation1 [shape = 'u32[144,128]{1,0:T(1,128)}', space=vmem, size = 0x12000, scoped, tag = 'internal scratch']
  %s0 = inlined_call_operand.vmem [shape: bf16[2,16,16,27], index: 0, kind: input, shape index: {}]
  %s1 = inlined_call_operand.vmem [shape: bf16[27,8], index: 1, kind: input, shape index: {}]
  %s2 = inlined_call_operand.vmem [shape: f32[1,8], index: 2, kind: input, shape index: {}]
  %s3 = inlined_call_operand.vmem [shape: bf16[2,16,16,8], index: 3, kind: output, shape index: {}]
  %s4 = sld [smem:[#allocation0]]
  $region45: #{_lambda_.2} parent=0
    _
  %s6 = ssub.s32 1, %s4
  %s7 = scalar_select 0, %s6, %s4
  loop: start=0, step=1, limit=4
  $region2: #{_lambda_.2} parent=0 // loop_pre_header
    _
  $region3: #{_lambda_.2} parent=0 // loop_header
    %s9 = sphi 0, %s13
    %p10 = scmp.ge.s32.totalorder %s9, 4
    %s16 = sphi 0, %s28
    %s17 = sphi 0, %s24
    %s18 = sphi 0, %s16
    %s19 = sphi 0, %s17
    %s20 = sphi 0, %s18
    %s21 = sphi 0, %s19
    %s33 = sphi 0, %s35
    %s36 = sphi 0, %s33
    %s37 = sphi 0, %s36
    %s53 = sphi 0, %s37
    %s57 = sphi 0, %s57
    %s59 = sphi 0, %s57
    %s60 = sphi 0, %s59
    %s74 = sphi 0, %s60
    %s78 = sphi 0, %s78
    %s80 = sphi 0, %s78
    %s81 = sphi 0, %s80
    %s95 = sphi 0, %s81
    %s103 = sphi 0, %s105
    %s106 = sphi 0, %s103
    %s107 = sphi 0, %s106
    %s123 = sphi 0, %s107
  $region4: #{_lambda_.2} parent=0 // loop_header_branch
    %12 = sbr.rel (%p10) target = $region8
  $region5: #{_lambda_.2} parent=0 // loop_body
    %s14 = ssub.s32 %s9, 1
    %s15 = ssub.s32 %s9, 2
    %s22 = sadd.s32 1, %s17
    %p23 = scmp.ge.s32.totalorder %s22, 1
    %s24 = scalar_select %p23, 0, %s22
    %s25 = sadd.s32 1, %s16
    %s26 = scalar_select %p23, %s25, %s16
    %p27 = scmp.ge.s32.totalorder %s26, 2
    %s28 = scalar_select %p27, 0, %s26
    %s29 = ssub.s32 %s16, %s28
    %s30 = ssub.s32 %s17, %s24
    %s31 = sor.u32 %s29, %s30
    %p32 = scmp.eq.s32.totalorder %s31, 0
    %s34 = sadd.s32 %s33, 1
    %s35 = scalar_select %p32, %s33, %s34
    %p38 = pneg %p32
    %p39 = scmp.eq.s32.totalorder %s9, 1
    %p40 = por %p38, %p39
    %p41 = scmp.ne.s32.totalorder %s33, %s36
    %p42 = scmp.eq.s32.totalorder %s9, 0
    %p43 = por %p41, %p42
    %p44 = scmp.ne.s32.totalorder %s33, %s36
    %p45 = scmp.eq.s32.totalorder %s14, 1
    %p46 = por %p44, %p45
    %p47 = scmp.ne.s32.totalorder %s36, %s37
    %p48 = scmp.eq.s32.totalorder %s14, 0
    %p49 = por %p47, %p48
    %p50 = scmp.ne.s32.totalorder %s36, %s37
    %p51 = scmp.eq.s32.totalorder %s15, 1
    %p52 = por %p50, %p51
    %p54 = scmp.ne.s32.totalorder %s37, %s53
    %p55 = scmp.eq.s32.totalorder %s15, 0
    %p56 = por %p54, %p55
    %s58 = sadd.s32 %s57, 1
    %p61 = scmp.eq.s32.totalorder %s9, 1
    %p62 = scmp.ne.s32.totalorder %s57, %s59
    %p63 = scmp.eq.s32.totalorder %s9, 0
    %p64 = por %p62, %p63
    %p65 = scmp.ne.s32.totalorder %s57, %s59
    %p66 = scmp.eq.s32.totalorder %s14, 1
    %p67 = por %p65, %p66
    %p68 = scmp.ne.s32.totalorder %s59, %s60
    %p69 = scmp.eq.s32.totalorder %s14, 0
    %p70 = por %p68, %p69
    %p71 = scmp.ne.s32.totalorder %s59, %s60
    %p72 = scmp.eq.s32.totalorder %s15, 1
    %p73 = por %p71, %p72
    %p75 = scmp.ne.s32.totalorder %s60, %s74
    %p76 = scmp.eq.s32.totalorder %s15, 0
    %p77 = por %p75, %p76
    %s79 = sadd.s32 %s78, 1
    %p82 = scmp.eq.s32.totalorder %s9, 1
    %p83 = scmp.ne.s32.totalorder %s78, %s80
    %p84 = scmp.eq.s32.totalorder %s9, 0
    %p85 = por %p83, %p84
    %p86 = scmp.ne.s32.totalorder %s78, %s80
    %p87 = scmp.eq.s32.totalorder %s14, 1
    %p88 = por %p86, %p87
    %p89 = scmp.ne.s32.totalorder %s80, %s81
    %p90 = scmp.eq.s32.totalorder %s14, 0
    %p91 = por %p89, %p90
    %p92 = scmp.ne.s32.totalorder %s80, %s81
    %p93 = scmp.eq.s32.totalorder %s15, 1
    %p94 = por %p92, %p93
    %p96 = scmp.ne.s32.totalorder %s81, %s95
    %p97 = scmp.eq.s32.totalorder %s15, 0
    %p98 = por %p96, %p97
    %s99 = ssub.s32 %s16, %s28
    %s100 = ssub.s32 %s17, %s24
    %s101 = sor.u32 %s99, %s100
    %p102 = scmp.eq.s32.totalorder %s101, 0
    %s104 = sadd.s32 %s103, 1
    %s105 = scalar_select %p102, %s103, %s104
    %p108 = pneg %p102
    %p109 = scmp.eq.s32.totalorder %s9, 1
    %p110 = por %p108, %p109
    %p111 = scmp.ne.s32.totalorder %s103, %s106
    %p112 = scmp.eq.s32.totalorder %s9, 0
    %p113 = por %p111, %p112
    %p114 = scmp.ne.s32.totalorder %s103, %s106
    %p115 = scmp.eq.s32.totalorder %s14, 1
    %p116 = por %p114, %p115
    %p117 = scmp.ne.s32.totalorder %s106, %s107
    %p118 = scmp.eq.s32.totalorder %s14, 0
    %p119 = por %p117, %p118
    %p120 = scmp.ne.s32.totalorder %s106, %s107
    %p121 = scmp.eq.s32.totalorder %s15, 1
    %p122 = por %p120, %p121
    %p124 = scmp.ne.s32.totalorder %s107, %s123
    %p125 = scmp.eq.s32.totalorder %s15, 0
    %p126 = por %p124, %p125
    %p127 = scmp.le.s32.totalorder 1, %s9
    %p128 = scmp.lt.s32.totalorder %s9, 3
    %p129 = pnand %p127, %p128
    %p130 = pneg %p129
    // Predicated region
    $region9: #{_lambda_.2} parent=5 // pred_check
      _
    $region10: #{_lambda_.2} parent=5 // pred_check_branch
      %132 = sbr.rel (%p129) target = $region12
    $region11: #{_lambda_.2} parent=5 // pred_region
      %s133 = ssub.s32 %s9, 1
      // Predicated region
      $region13: #{_lambda_.2} parent=11 // pred_check
        %p134 = pneg %p70
      $region14: #{_lambda_.2} parent=11 // pred_check_branch
        %136 = sbr.rel (%p134) target = $region16
      $region15: #{_lambda_.2} parent=11 // pred_region
        _
      $region16: #{_lambda_.2} parent=11 // pred_fallthru
        _
      // Predicated region
      $region17: #{_lambda_.2} parent=11 // pred_check
        %p137 = pneg %p91
      $region18: #{_lambda_.2} parent=11 // pred_check_branch
        %139 = sbr.rel (%p137) target = $region20
      $region19: #{_lambda_.2} parent=11 // pred_region
        _
      $region20: #{_lambda_.2} parent=11 // pred_fallthru
        _
    $region12: #{_lambda_.2} parent=5 // pred_fallthru
      _
    %p140 = scmp.lt.s32.totalorder %s9, 2
    // Predicated region
    $region21: #{_lambda_.2} parent=5 // pred_check
      %p141 = pneg %p140
    $region22: #{_lambda_.2} parent=5 // pred_check_branch
      %143 = sbr.rel (%p141) target = $region24
    $region23: #{_lambda_.2} parent=5 // pred_region
      // Predicated region
      $region25: #{_lambda_.2} parent=23 // pred_check
        %p144 = pneg %p43
      $region26: #{_lambda_.2} parent=23 // pred_check_branch
        %146 = sbr.rel (%p144) target = $region28
      $region27: #{_lambda_.2} parent=23 // pred_region
        %s147 = smul.u32 16, %s17
        %p148 = scmp.lt.s32.totalorder %s16, 1
        %s149 = scalar_select %p148, %s16, 1
        %p150 = scmp.lt.s32.totalorder %s147, 15
        %s151 = scalar_select %p150, %s147, 15
        %s152 = smul.addr %s151, 2
        %s153 = smul.addr %s149, 32
        %s154 = sadd.s32 %s152, %s153
        %s155 = smul.addr %s154, 4
        %s156 = scalar_lea.vmem %s0, %s155
        %s157 = smul.u32 16, %s17
      $region28: #{_lambda_.2} parent=23 // pred_fallthru
        _
    $region24: #{_lambda_.2} parent=5 // pred_fallthru
      _
    %p158 = scmp.le.s32.totalorder 1, %s9
    %p159 = scmp.lt.s32.totalorder %s9, 3
    %p160 = pnand %p158, %p159
    %p161 = pneg %p160
    // Predicated region
    $region29: #{_lambda_.2} parent=5 // pred_check
      _
    $region30: #{_lambda_.2} parent=5 // pred_check_branch
      %163 = sbr.rel (%p160) target = $region32
    $region31: #{_lambda_.2} parent=5 // pred_region
      %s164 = ssub.s32 %s9, 1
      %s165 = smul.u32 16, %s19
      %p166 = scmp.lt.s32.totalorder %s18, 1
      %s167 = scalar_select %p166, %s18, 1
      %p168 = scmp.lt.s32.totalorder %s165, 15
      %s169 = scalar_select %p168, %s165, 15
      %s170 = smul.addr %s169, 2
      %s171 = smul.addr %s167, 32
      %s172 = sadd.s32 %s170, %s171
      %s173 = smul.addr %s172, 4
      %s174 = scalar_lea.vmem %s0, %s173
      %p175 = pneg %p49
      %p176 = pneg %p46
      %p177 = pneg %p70
      %p178 = pneg %p67
      %p179 = pneg %p91
      %p180 = pneg %p88
      %p181 = pneg %p119
      %p182 = pneg %p116
      %s183 = smul.u32 16, %s19
      %p184 = scmp.lt.s32.totalorder %s18, 1
      %s185 = scalar_select %p184, %s18, 1
      %p186 = scmp.lt.s32.totalorder %s183, 15
      %s187 = scalar_select %p186, %s183, 15
      %s188 = smul.addr %s187, 2
      %s189 = smul.addr %s185, 32
      %s190 = sadd.s32 %s188, %s189
      %s191 = smul.addr %s190, 4
      %s192 = scalar_lea.vmem %s3, %s191
      %s193 = smul.u32 16, %s19
      %p194 = scmp.lt.s32.totalorder %s18, 1
      %s195 = scalar_select %p194, %s18, 1
      %p196 = scmp.lt.s32.totalorder %s193, 15
      %s197 = scalar_select %p196, %s193, 15
      %s198 = smul.addr %s197, 2
      %s199 = smul.addr %s195, 32
      %s200 = sadd.s32 %s198, %s199
      %s201 = smul.addr %s200, 4
      %s202 = scalar_lea.vmem %s0, %s201
      %s203 = smul.u32 16, %s19
      %s204 = smul.u32 16, %s19
      %p205 = scmp.lt.s32.totalorder %s18, 1
      %s206 = scalar_select %p205, %s18, 1
      %p207 = scmp.lt.s32.totalorder %s204, 15
      %s208 = scalar_select %p207, %s204, 15
      %s209 = smul.addr %s208, 2
      %s210 = smul.addr %s206, 32
      %s211 = sadd.s32 %s209, %s210
      %s212 = smul.addr %s211, 4
      %s213 = scalar_lea.vmem %s3, %s212
      %s214 = smul.u32 16, %s19
      %v216 = vld [vmem:[%s202] sm:$0xf]
      %v217 = vld [vmem:[%s202 + $0x4] sm:$0xf]
      %v218 = vld [vmem:[%s202 + $0x8] sm:$0xf]
      %v219 = vld [vmem:[%s202 + $0xc] sm:$0xf]
      %v220 = vld [vmem:[%s202 + $0x10] sm:$0xf]
      %v221 = vld [vmem:[%s202 + $0x14] sm:$0xf]
      %v222 = vld [vmem:[%s202 + $0x18] sm:$0xf]
      %v223 = vld [vmem:[%s202 + $0x1c] sm:$0xf]
      %v224 = vld [vmem:[%s202 + $0x20] sm:$0xf]
      %v225 = vld [vmem:[%s202 + $0x24] sm:$0xf]
      %v226 = vld [vmem:[%s202 + $0x28] sm:$0xf]
      %v227 = vld [vmem:[%s202 + $0x2c] sm:$0xf]
      %v228 = vld [vmem:[%s202 + $0x30] sm:$0xf]
      %v229 = vld [vmem:[%s202 + $0x34] sm:$0xf]
      %v230 = vld [vmem:[%s202 + $0x38] sm:$0xf]
      %v231 = vld [vmem:[%s202 + $0x3c] sm:$0xf]
      %v232 = vld [vmem:[%s202 + $0x40] sm:$0xf]
      %v233 = vld [vmem:[%s202 + $0x44] sm:$0xf]
      %v234 = vld [vmem:[%s202 + $0x48] sm:$0xf]
      %v235 = vld [vmem:[%s202 + $0x4c] sm:$0xf]
      %v236 = vld [vmem:[%s202 + $0x50] sm:$0xf]
      %v237 = vld [vmem:[%s202 + $0x54] sm:$0xf]
      %v238 = vld [vmem:[%s202 + $0x58] sm:$0xf]
      %v239 = vld [vmem:[%s202 + $0x5c] sm:$0xf]
      %v240 = vld [vmem:[%s202 + $0x60] sm:$0xf]
      %v241 = vld [vmem:[%s202 + $0x64] sm:$0xf]
      %v242 = vld [vmem:[%s202 + $0x68] sm:$0xf]
      %v243 = vld [vmem:[%s202 + $0x6c] sm:$0xf]
      %v244 = vld [vmem:[%s202 + $0x70] sm:$0xf]
      %v245 = vld [vmem:[%s202 + $0x74] sm:$0xf]
      %v246 = vld [vmem:[%s202 + $0x78] sm:$0xf]
      %v247 = vld [vmem:[%s202 + $0x7c] sm:$0xf]
      %v248 = vld [vmem:[%s1] sm:$0xf]
      %v249 = vld [vmem:[%s1 + $0x4] sm:$0xf]
      %v250 = vld [vmem:[%s1 + $0x8] sm:$0xf]
      %v251 = vld [vmem:[%s1 + $0xc] sm:$0x3]
      %v252 = vld [vmem:[%s2] sm:$0x1]
      %v254 = vlaneseq
      %v255 = vshrl.u32 %v254, 7
      %v256 = vsub.s32 0, %v255
      %v257 = vrot.slane %v252, %v256
      %v291 = vunpack.c.l.b16 %v216
      %v292 = vunpack.c.l.b16 %v217
      %v293 = vunpack.c.l.b16 %v218
      %v294 = vunpack.c.l.b16 %v219
      %v295 = vunpack.c.l.b16 %v220
      %v296 = vunpack.c.l.b16 %v221
      %v297 = vunpack.c.l.b16 %v222
      %v298 = vunpack.c.l.b16 %v223
      %v299 = vunpack.c.l.b16 %v224
      %v300 = vunpack.c.l.b16 %v225
      %v301 = vunpack.c.l.b16 %v226
      %v302 = vunpack.c.l.b16 %v227
      %v303 = vunpack.c.l.b16 %v228
      %v304 = vunpack.c.l.b16 %v229
      %v305 = vunpack.c.l.b16 %v230
      %v306 = vunpack.c.l.b16 %v231
      %v307 = vunpack.c.l.b16 %v232
      %v308 = vunpack.c.l.b16 %v233
      %v309 = vunpack.c.l.b16 %v234
      %v310 = vunpack.c.l.b16 %v235
      %v311 = vunpack.c.l.b16 %v236
      %v312 = vunpack.c.l.b16 %v237
      %v313 = vunpack.c.l.b16 %v238
      %v314 = vunpack.c.l.b16 %v239
      %v315 = vunpack.c.l.b16 %v240
      %v316 = vunpack.c.l.b16 %v241
      %v317 = vunpack.c.l.b16 %v242
      %v318 = vunpack.c.l.b16 %v243
      %v319 = vunpack.c.l.b16 %v244
      %v320 = vunpack.c.l.b16 %v245
      %v321 = vunpack.c.l.b16 %v246
      %v322 = vunpack.c.l.b16 %v247
      %v323 = vpack.c.b16 %v292, %v291
      %v324 = vpack.c.b16 %v294, %v293
      %v325 = vpack.c.b16 %v296, %v295
      %v326 = vpack.c.b16 %v298, %v297
      %v327 = vpack.c.b16 %v300, %v299
      %v328 = vpack.c.b16 %v302, %v301
      %v329 = vpack.c.b16 %v304, %v303
      %v330 = vpack.c.b16 %v306, %v305
      %v331 = vpack.c.b16 %v308, %v307
      %v332 = vpack.c.b16 %v310, %v309
      %v333 = vpack.c.b16 %v312, %v311
      %v334 = vpack.c.b16 %v314, %v313
      %v335 = vpack.c.b16 %v316, %v315
      %v336 = vpack.c.b16 %v318, %v317
      %v337 = vpack.c.b16 %v320, %v319
      %v338 = vpack.c.b16 %v322, %v321
      %v343 = vunpack.c.l.b16 %v248
      %v344 = vunpack.c.l.b16 %v249
      %v345 = vunpack.c.l.b16 %v250
      %v346 = vunpack.c.l.b16 %v251
      %v347 = vpack.c.b16 %v344, %v343
      %v348 = vpack.c.b16 %v346, %v345
      %vm350 = vcmask 220160
      %v352 = vsel %vm350, %v323, 0
      %v355 = vsel %vm350, %v324, 0
      %v358 = vsel %vm350, %v325, 0
      %v361 = vsel %vm350, %v326, 0
      %v364 = vsel %vm350, %v327, 0
      %v367 = vsel %vm350, %v328, 0
      %v370 = vsel %vm350, %v329, 0
      %v373 = vsel %vm350, %v330, 0
      %v376 = vsel %vm350, %v331, 0
      %v379 = vsel %vm350, %v332, 0
      %v382 = vsel %vm350, %v333, 0
      %v385 = vsel %vm350, %v334, 0
      %v388 = vsel %vm350, %v335, 0
      %v391 = vsel %vm350, %v336, 0
      %v394 = vsel %vm350, %v337, 0
      %v397 = vsel %vm350, %v338, 0
      %vm399 = vcmask 1044480
      %vm400 = vcmask 1045504
      %v401 = vsel %vm399, 4294967295, 65535
      %v402 = vsel %vm400, %v401, 0
      %v404 = vand.u32 %v348, %v402
      %406 = vmatprep.subr.bf16.mxu0 0
      %407 = vmatpush1.bf16.msra.mxu0 %v347
      %408 = vmatprep.subr.bf16.mxu0 0
      %409 = vmatpush1.bf16.msra.mxu0 %v404
      %410 = vmatprep.subr.bf16.mxu0 0
      %411 = vmatpush1.bf16.msra.mxu0 0
      %412 = vmatprep.subr.bf16.mxu0 0
      %413 = vmatpush1.bf16.msra.mxu0 0
      %414 = vmatprep.subr.bf16.mxu0 0
      %415 = vmatpush1.bf16.msra.mxu0 0
      %416 = vmatprep.subr.bf16.mxu0 0
      %417 = vmatpush1.bf16.msra.mxu0 0
      %418 = vmatprep.subr.bf16.mxu0 0
      %419 = vmatpush1.bf16.msra.mxu0 0
      %420 = vmatprep.subr.bf16.mxu0 0
      %421 = vmatpush1.bf16.msra.mxu0 0
      %422 = vmatprep.subr.bf16.mxu0 0
      %423 = vmatpush1.bf16.msra.mxu0 0
      %424 = vmatprep.subr.bf16.mxu0 0
      %425 = vmatpush1.bf16.msra.mxu0 0
      %426 = vmatprep.subr.bf16.mxu0 0
      %427 = vmatpush1.bf16.msra.mxu0 0
      %428 = vmatprep.subr.bf16.mxu0 0
      %429 = vmatpush1.bf16.msra.mxu0 0
      %430 = vmatprep.subr.bf16.mxu0 0
      %431 = vmatpush1.bf16.msra.mxu0 0
      %432 = vmatprep.subr.bf16.mxu0 0
      %433 = vmatpush1.bf16.msra.mxu0 0
      %434 = vmatprep.subr.bf16.mxu0 0
      %435 = vmatpush1.bf16.msra.mxu0 0
      %436 = vmatprep.subr.bf16.mxu0 0
      %437 = vmatpush1.bf16.msra.mxu0 0
      %438 = vmatprep.mubr.bf16.mxu0 0
      %439 = vmatmul.mubr.bf16.gmra.mrb[0].mxu0 %v352
      %v440 = vpop.f32.mrb[0].mxu0
      %v441 = vadd.f32 %v257, %v440
      %v442 = vpop.f32.mrb[0].mxu0
      %v443 = vpop.f32.mrb[0].mxu0
      %v444 = vadd.f32 %v257, %v443
      %v445 = vpop.f32.mrb[0].mxu0
      %446 = vmatprep.mubr.bf16.mxu0 0
      %447 = vmatmul.mubr.bf16.gmra.mrb[0].mxu0 %v355
      %v448 = vpop.f32.mrb[0].mxu0
      %v449 = vadd.f32 %v257, %v448
      %v450 = vpop.f32.mrb[0].mxu0
      %v451 = vpop.f32.mrb[0].mxu0
      %v452 = vadd.f32 %v257, %v451
      %v453 = vpop.f32.mrb[0].mxu0
      %454 = vmatprep.mubr.bf16.mxu0 0
      %455 = vmatmul.mubr.bf16.gmra.mrb[0].mxu0 %v358
      %v456 = vpop.f32.mrb[0].mxu0
      %v457 = vadd.f32 %v257, %v456
      %v458 = vpop.f32.mrb[0].mxu0
      %v459 = vpop.f32.mrb[0].mxu0
      %v460 = vadd.f32 %v257, %v459
      %v461 = vpop.f32.mrb[0].mxu0
      %462 = vmatprep.mubr.bf16.mxu0 0
      %463 = vmatmul.mubr.bf16.gmra.mrb[0].mxu0 %v361
      %v464 = vpop.f32.mrb[0].mxu0
      %v465 = vadd.f32 %v257, %v464
      %v466 = vpop.f32.mrb[0].mxu0
      %v467 = vpop.f32.mrb[0].mxu0
      %v468 = vadd.f32 %v257, %v467
      %v469 = vpop.f32.mrb[0].mxu0
      %470 = vmatprep.mubr.bf16.mxu0 0
      %471 = vmatmul.mubr.bf16.gmra.mrb[0].mxu0 %v364
      %v472 = vpop.f32.mrb[0].mxu0
      %v473 = vadd.f32 %v257, %v472
      %v474 = vpop.f32.mrb[0].mxu0
      %v475 = vpop.f32.mrb[0].mxu0
      %v476 = vadd.f32 %v257, %v475
      %v477 = vpop.f32.mrb[0].mxu0
      %478 = vmatprep.mubr.bf16.mxu0 0
      %479 = vmatmul.mubr.bf16.gmra.mrb[0].mxu0 %v367
      %v480 = vpop.f32.mrb[0].mxu0
      %v481 = vadd.f32 %v257, %v480
      %v482 = vpop.f32.mrb[0].mxu0
      %v483 = vpop.f32.mrb[0].mxu0
      %v484 = vadd.f32 %v257, %v483
      %v485 = vpop.f32.mrb[0].mxu0
      %486 = vmatprep.mubr.bf16.mxu0 0
      %487 = vmatmul.mubr.bf16.gmra.mrb[0].mxu0 %v370
      %v488 = vpop.f32.mrb[0].mxu0
      %v489 = vadd.f32 %v257, %v488
      %v490 = vpop.f32.mrb[0].mxu0
      %v491 = vpop.f32.mrb[0].mxu0
      %v492 = vadd.f32 %v257, %v491
      %v493 = vpop.f32.mrb[0].mxu0
      %494 = vmatprep.mubr.bf16.mxu0 0
      %495 = vmatmul.mubr.bf16.gmra.mrb[0].mxu0 %v373
      %v496 = vpop.f32.mrb[0].mxu0
      %v497 = vadd.f32 %v257, %v496
      %v498 = vpop.f32.mrb[0].mxu0
      %v499 = vpop.f32.mrb[0].mxu0
      %v500 = vadd.f32 %v257, %v499
      %v501 = vpop.f32.mrb[0].mxu0
      %502 = vmatprep.mubr.bf16.mxu0 0
      %503 = vmatmul.mubr.bf16.gmra.mrb[0].mxu0 %v376
      %v504 = vpop.f32.mrb[0].mxu0
      %v505 = vadd.f32 %v257, %v504
      %v506 = vpop.f32.mrb[0].mxu0
      %v507 = vpop.f32.mrb[0].mxu0
      %v508 = vadd.f32 %v257, %v507
      %v509 = vpop.f32.mrb[0].mxu0
      %510 = vmatprep.mubr.bf16.mxu0 0
      %511 = vmatmul.mubr.bf16.gmra.mrb[0].mxu0 %v379
      %v512 = vpop.f32.mrb[0].mxu0
      %v513 = vadd.f32 %v257, %v512
      %v514 = vpop.f32.mrb[0].mxu0
      %v515 = vpop.f32.mrb[0].mxu0
      %v516 = vadd.f32 %v257, %v515
      %v517 = vpop.f32.mrb[0].mxu0
      %518 = vmatprep.mubr.bf16.mxu0 0
      %519 = vmatmul.mubr.bf16.gmra.mrb[0].mxu0 %v382
      %v520 = vpop.f32.mrb[0].mxu0
      %v521 = vadd.f32 %v257, %v520
      %v522 = vpop.f32.mrb[0].mxu0
      %v523 = vpop.f32.mrb[0].mxu0
      %v524 = vadd.f32 %v257, %v523
      %v525 = vpop.f32.mrb[0].mxu0
      %526 = vmatprep.mubr.bf16.mxu0 0
      %527 = vmatmul.mubr.bf16.gmra.mrb[0].mxu0 %v385
      %v528 = vpop.f32.mrb[0].mxu0
      %v529 = vadd.f32 %v257, %v528
      %v530 = vpop.f32.mrb[0].mxu0
      %v531 = vpop.f32.mrb[0].mxu0
      %v532 = vadd.f32 %v257, %v531
      %v533 = vpop.f32.mrb[0].mxu0
      %534 = vmatprep.mubr.bf16.mxu0 0
      %535 = vmatmul.mubr.bf16.gmra.mrb[0].mxu0 %v388
      %v536 = vpop.f32.mrb[0].mxu0
      %v537 = vadd.f32 %v257, %v536
      %v538 = vpop.f32.mrb[0].mxu0
      %v539 = vpop.f32.mrb[0].mxu0
      %v540 = vadd.f32 %v257, %v539
      %v541 = vpop.f32.mrb[0].mxu0
      %542 = vmatprep.mubr.bf16.mxu0 0
      %543 = vmatmul.mubr.bf16.gmra.mrb[0].mxu0 %v391
      %v544 = vpop.f32.mrb[0].mxu0
      %v545 = vadd.f32 %v257, %v544
      %v546 = vpop.f32.mrb[0].mxu0
      %v547 = vpop.f32.mrb[0].mxu0
      %v548 = vadd.f32 %v257, %v547
      %v549 = vpop.f32.mrb[0].mxu0
      %550 = vmatprep.mubr.bf16.mxu0 0
      %551 = vmatmul.mubr.bf16.gmra.mrb[0].mxu0 %v394
      %v552 = vpop.f32.mrb[0].mxu0
      %v553 = vadd.f32 %v257, %v552
      %v554 = vpop.f32.mrb[0].mxu0
      %v555 = vpop.f32.mrb[0].mxu0
      %v556 = vadd.f32 %v257, %v555
      %v557 = vpop.f32.mrb[0].mxu0
      %558 = vmatprep.mubr.bf16.mxu0 0
      %559 = vmatmul.mubr.bf16.gmra.mrb[0].mxu0 %v397
      %v560 = vpop.f32.mrb[0].mxu0
      %v561 = vadd.f32 %v257, %v560
      %v562 = vpop.f32.mrb[0].mxu0
      %v563 = vpop.f32.mrb[0].mxu0
      %v564 = vadd.f32 %v257, %v563
      %v565 = vpop.f32.mrb[0].mxu0
      %566 = vdwg.mxu0
      %v567 = vpack.c.bf16 %v444, %v441
      %v568 = vpack.c.bf16 %v452, %v449
      %v569 = vpack.c.bf16 %v460, %v457
      %v570 = vpack.c.bf16 %v468, %v465
      %v571 = vpack.c.bf16 %v476, %v473
      %v572 = vpack.c.bf16 %v484, %v481
      %v573 = vpack.c.bf16 %v492, %v489
      %v574 = vpack.c.bf16 %v500, %v497
      %v575 = vpack.c.bf16 %v508, %v505
      %v576 = vpack.c.bf16 %v516, %v513
      %v577 = vpack.c.bf16 %v524, %v521
      %v578 = vpack.c.bf16 %v532, %v529
      %v579 = vpack.c.bf16 %v540, %v537
      %v580 = vpack.c.bf16 %v548, %v545
      %v581 = vpack.c.bf16 %v556, %v553
      %v582 = vpack.c.bf16 %v564, %v561
      %v599 = vunpack.c.l.b16 %v567
      %v600 = vunpack.c.h.b16 %v567
      %v601 = vunpack.c.l.b16 %v568
      %v602 = vunpack.c.h.b16 %v568
      %v603 = vunpack.c.l.b16 %v569
      %v604 = vunpack.c.h.b16 %v569
      %v605 = vunpack.c.l.b16 %v570
      %v606 = vunpack.c.h.b16 %v570
      %v607 = vunpack.c.l.b16 %v571
      %v608 = vunpack.c.h.b16 %v571
      %v609 = vunpack.c.l.b16 %v572
      %v610 = vunpack.c.h.b16 %v572
      %v611 = vunpack.c.l.b16 %v573
      %v612 = vunpack.c.h.b16 %v573
      %v613 = vunpack.c.l.b16 %v574
      %v614 = vunpack.c.h.b16 %v574
      %v615 = vunpack.c.l.b16 %v575
      %v616 = vunpack.c.h.b16 %v575
      %v617 = vunpack.c.l.b16 %v576
      %v618 = vunpack.c.h.b16 %v576
      %v619 = vunpack.c.l.b16 %v577
      %v620 = vunpack.c.h.b16 %v577
      %v621 = vunpack.c.l.b16 %v578
      %v622 = vunpack.c.h.b16 %v578
      %v623 = vunpack.c.l.b16 %v579
      %v624 = vunpack.c.h.b16 %v579
      %v625 = vunpack.c.l.b16 %v580
      %v626 = vunpack.c.h.b16 %v580
      %v627 = vunpack.c.l.b16 %v581
      %v628 = vunpack.c.h.b16 %v581
      %v629 = vunpack.c.l.b16 %v582
      %v630 = vunpack.c.h.b16 %v582
      %v631 = vpack.c.b16 %v599, %v599
      %v632 = vpack.c.b16 %v600, %v600
      %v633 = vpack.c.b16 %v601, %v601
      %v634 = vpack.c.b16 %v602, %v602
      %v635 = vpack.c.b16 %v603, %v603
      %v636 = vpack.c.b16 %v604, %v604
      %v637 = vpack.c.b16 %v605, %v605
      %v638 = vpack.c.b16 %v606, %v606
      %v639 = vpack.c.b16 %v607, %v607
      %v640 = vpack.c.b16 %v608, %v608
      %v641 = vpack.c.b16 %v609, %v609
      %v642 = vpack.c.b16 %v610, %v610
      %v643 = vpack.c.b16 %v611, %v611
      %v644 = vpack.c.b16 %v612, %v612
      %v645 = vpack.c.b16 %v613, %v613
      %v646 = vpack.c.b16 %v614, %v614
      %v647 = vpack.c.b16 %v615, %v615
      %v648 = vpack.c.b16 %v616, %v616
      %v649 = vpack.c.b16 %v617, %v617
      %v650 = vpack.c.b16 %v618, %v618
      %v651 = vpack.c.b16 %v619, %v619
      %v652 = vpack.c.b16 %v620, %v620
      %v653 = vpack.c.b16 %v621, %v621
      %v654 = vpack.c.b16 %v622, %v622
      %v655 = vpack.c.b16 %v623, %v623
      %v656 = vpack.c.b16 %v624, %v624
      %v657 = vpack.c.b16 %v625, %v625
      %v658 = vpack.c.b16 %v626, %v626
      %v659 = vpack.c.b16 %v627, %v627
      %v660 = vpack.c.b16 %v628, %v628
      %v661 = vpack.c.b16 %v629, %v629
      %v662 = vpack.c.b16 %v630, %v630
      %vm695 = vcmask 60416
      %696 = vst.msk [vmem:[%s213] sm:$0xf] %vm695, %v631
      %697 = vst.msk [vmem:[%s213 + $0x4] sm:$0xf] %vm695, %v632
      %698 = vst.msk [vmem:[%s213 + $0x8] sm:$0xf] %vm695, %v633
      %699 = vst.msk [vmem:[%s213 + $0xc] sm:$0xf] %vm695, %v634
      %700 = vst.msk [vmem:[%s213 + $0x10] sm:$0xf] %vm695, %v635
      %701 = vst.msk [vmem:[%s213 + $0x14] sm:$0xf] %vm695, %v636
      %702 = vst.msk [vmem:[%s213 + $0x18] sm:$0xf] %vm695, %v637
      %703 = vst.msk [vmem:[%s213 + $0x1c] sm:$0xf] %vm695, %v638
      %704 = vst.msk [vmem:[%s213 + $0x20] sm:$0xf] %vm695, %v639
      %705 = vst.msk [vmem:[%s213 + $0x24] sm:$0xf] %vm695, %v640
      %706 = vst.msk [vmem:[%s213 + $0x28] sm:$0xf] %vm695, %v641
      %707 = vst.msk [vmem:[%s213 + $0x2c] sm:$0xf] %vm695, %v642
      %708 = vst.msk [vmem:[%s213 + $0x30] sm:$0xf] %vm695, %v643
      %709 = vst.msk [vmem:[%s213 + $0x34] sm:$0xf] %vm695, %v644
      %710 = vst.msk [vmem:[%s213 + $0x38] sm:$0xf] %vm695, %v645
      %711 = vst.msk [vmem:[%s213 + $0x3c] sm:$0xf] %vm695, %v646
      %712 = vst.msk [vmem:[%s213 + $0x40] sm:$0xf] %vm695, %v647
      %713 = vst.msk [vmem:[%s213 + $0x44] sm:$0xf] %vm695, %v648
      %714 = vst.msk [vmem:[%s213 + $0x48] sm:$0xf] %vm695, %v649
      %715 = vst.msk [vmem:[%s213 + $0x4c] sm:$0xf] %vm695, %v650
      %716 = vst.msk [vmem:[%s213 + $0x50] sm:$0xf] %vm695, %v651
      %717 = vst.msk [vmem:[%s213 + $0x54] sm:$0xf] %vm695, %v652
      %718 = vst.msk [vmem:[%s213 + $0x58] sm:$0xf] %vm695, %v653
      %719 = vst.msk [vmem:[%s213 + $0x5c] sm:$0xf] %vm695, %v654
      %720 = vst.msk [vmem:[%s213 + $0x60] sm:$0xf] %vm695, %v655
      %721 = vst.msk [vmem:[%s213 + $0x64] sm:$0xf] %vm695, %v656
      %722 = vst.msk [vmem:[%s213 + $0x68] sm:$0xf] %vm695, %v657
      %723 = vst.msk [vmem:[%s213 + $0x6c] sm:$0xf] %vm695, %v658
      %724 = vst.msk [vmem:[%s213 + $0x70] sm:$0xf] %vm695, %v659
      %725 = vst.msk [vmem:[%s213 + $0x74] sm:$0xf] %vm695, %v660
      %726 = vst.msk [vmem:[%s213 + $0x78] sm:$0xf] %vm695, %v661
      %727 = vst.msk [vmem:[%s213 + $0x7c] sm:$0xf] %vm695, %v662
      %s728 = smul.u32 16, %s19
      %p729 = scmp.lt.s32.totalorder %s18, 1
      %s730 = scalar_select %p729, %s18, 1
      %p731 = scmp.lt.s32.totalorder %s728, 15
      %s732 = scalar_select %p731, %s728, 15
      %s733 = smul.addr %s732, 2
      %s734 = smul.addr %s730, 32
      %s735 = sadd.s32 %s733, %s734
      %s736 = smul.addr %s735, 4
      %s737 = scalar_lea.vmem %s3, %s736
      // Predicated region
      $region33: #{_lambda_.2} parent=31 // pred_check
        %p738 = pneg %p116
      $region34: #{_lambda_.2} parent=31 // pred_check_branch
        %740 = sbr.rel (%p738) target = $region36
      $region35: #{_lambda_.2} parent=31 // pred_region
        %s741 = smul.u32 16, %s19
      $region36: #{_lambda_.2} parent=31 // pred_fallthru
        _
    $region32: #{_lambda_.2} parent=5 // pred_fallthru
      _
    %p742 = scmp.le.s32.totalorder 2, %s9
    // Predicated region
    $region37: #{_lambda_.2} parent=5 // pred_check
      %p743 = pneg %p742
    $region38: #{_lambda_.2} parent=5 // pred_check_branch
      %745 = sbr.rel (%p743) target = $region40
    $region39: #{_lambda_.2} parent=5 // pred_region
      %s746 = ssub.s32 %s9, 2
      // Predicated region
      $region41: #{_lambda_.2} parent=39 // pred_check
        %p747 = pneg %p122
      $region42: #{_lambda_.2} parent=39 // pred_check_branch
        %749 = sbr.rel (%p747) target = $region44
      $region43: #{_lambda_.2} parent=39 // pred_region
        %s750 = smul.u32 16, %s21
        %p751 = scmp.lt.s32.totalorder %s20, 1
        %s752 = scalar_select %p751, %s20, 1
        %p753 = scmp.lt.s32.totalorder %s750, 15
        %s754 = scalar_select %p753, %s750, 15
        %s755 = smul.addr %s754, 2
        %s756 = smul.addr %s752, 32
        %s757 = sadd.s32 %s755, %s756
        %s758 = smul.addr %s757, 4
        %s759 = scalar_lea.vmem %s3, %s758
      $region44: #{_lambda_.2} parent=39 // pred_fallthru
        _
    $region40: #{_lambda_.2} parent=5 // pred_fallthru
      _
  $region6: #{_lambda_.2} parent=0 // loop_footer
    %s13 = sadd.s32 1, %s9
  $region7: #{_lambda_.2} parent=0 // loop_footer_branch
    %8 = sbr.rel target = $region3
  $region8: #{_lambda_.2} parent=0 // loop_exit
    _

// kernel: _lambda_.3
$region0: #{_lambda_.3}
  #allocation0 [shape = 'u32[]', space=smem, size = 0x4, offset = 0x4, fixed_abs, tag = 'smem constant byte address 0x4 - core index']
  #allocation1 [shape = 'u32[144,128]{1,0:T(1,128)}', space=vmem, size = 0x12000, scoped, tag = 'internal scratch']
  %s0 = inlined_call_operand.vmem [shape: f32[128,3], index: 0, kind: input, shape index: {}]
  %s1 = inlined_call_operand.vmem [shape: bf16[128,72], index: 1, kind: input, shape index: {}]
  %s2 = inlined_call_operand.vmem [shape: f32[3,256], index: 2, kind: input, shape index: {}]
  %s3 = inlined_call_operand.vmem [shape: f32[1,256], index: 3, kind: input, shape index: {}]
  %s4 = inlined_call_operand.vmem [shape: bf16[256,384], index: 4, kind: input, shape index: {}]
  %s5 = inlined_call_operand.vmem [shape: f32[1,384], index: 5, kind: input, shape index: {}]
  %s6 = inlined_call_operand.vmem [shape: f32[128,3], index: 6, kind: output, shape index: {}]
  %s7 = sld [smem:[#allocation0]]
  $region34: #{_lambda_.3} parent=0
    _
  %s9 = ssub.s32 1, %s7
  %s10 = scalar_select 0, %s9, %s7
  // Predicated region
  $region2: #{_lambda_.3} parent=0 // pred_check
    _
  $region3: #{_lambda_.3} parent=0 // pred_check_branch
    %12 = sbr.rel (0) target = $region5
  $region4: #{_lambda_.3} parent=0 // pred_region
    _
  $region5: #{_lambda_.3} parent=0 // pred_fallthru
    _
  // Predicated region
  $region6: #{_lambda_.3} parent=0 // pred_check
    _
  $region7: #{_lambda_.3} parent=0 // pred_check_branch
    %14 = sbr.rel (0) target = $region9
  $region8: #{_lambda_.3} parent=0 // pred_region
    _
  $region9: #{_lambda_.3} parent=0 // pred_fallthru
    _
  // Predicated region
  $region10: #{_lambda_.3} parent=0 // pred_check
    _
  $region11: #{_lambda_.3} parent=0 // pred_check_branch
    %16 = sbr.rel (0) target = $region13
  $region12: #{_lambda_.3} parent=0 // pred_region
    _
  $region13: #{_lambda_.3} parent=0 // pred_fallthru
    _
  // Predicated region
  $region14: #{_lambda_.3} parent=0 // pred_check
    _
  $region15: #{_lambda_.3} parent=0 // pred_check_branch
    %18 = sbr.rel (0) target = $region17
  $region16: #{_lambda_.3} parent=0 // pred_region
    _
  $region17: #{_lambda_.3} parent=0 // pred_fallthru
    _
  // Predicated region
  $region18: #{_lambda_.3} parent=0 // pred_check
    _
  $region19: #{_lambda_.3} parent=0 // pred_check_branch
    %20 = sbr.rel (0) target = $region21
  $region20: #{_lambda_.3} parent=0 // pred_region
    _
  $region21: #{_lambda_.3} parent=0 // pred_fallthru
    _
  // Predicated region
  $region22: #{_lambda_.3} parent=0 // pred_check
    _
  $region23: #{_lambda_.3} parent=0 // pred_check_branch
    %22 = sbr.rel (0) target = $region25
  $region24: #{_lambda_.3} parent=0 // pred_region
    _
  $region25: #{_lambda_.3} parent=0 // pred_fallthru
    _
  %v24 = vld [vmem:[%s0] sm:$0xff]
  %v25 = vld [vmem:[%s0 + $0x8] sm:$0xff]
  %v26 = vld [vmem:[%s0 + $0x10] sm:$0xff]
  %v27 = vld [vmem:[%s0 + $0x18] sm:$0xff]
  %v28 = vld [vmem:[%s0 + $0x20] sm:$0xff]
  %v29 = vld [vmem:[%s0 + $0x28] sm:$0xff]
  %v30 = vld [vmem:[%s0 + $0x30] sm:$0xff]
  %v31 = vld [vmem:[%s0 + $0x38] sm:$0xff]
  %v32 = vld [vmem:[%s0 + $0x40] sm:$0xff]
  %v33 = vld [vmem:[%s0 + $0x48] sm:$0xff]
  %v34 = vld [vmem:[%s0 + $0x50] sm:$0xff]
  %v35 = vld [vmem:[%s0 + $0x58] sm:$0xff]
  %v36 = vld [vmem:[%s0 + $0x60] sm:$0xff]
  %v37 = vld [vmem:[%s0 + $0x68] sm:$0xff]
  %v38 = vld [vmem:[%s0 + $0x70] sm:$0xff]
  %v39 = vld [vmem:[%s0 + $0x78] sm:$0xff]
  %v40 = vld [vmem:[%s2] sm:$0x77]
  %v41 = vld [vmem:[%s3] sm:$0x3]
  %43 = vset.pattern.permute.xlu0 0
  %44 = vperm.xlu0 %43, %v24
  %v45 = vpop.permute.xlu0 %44
  %48 = vset.pattern.permute.xlu0 0
  %49 = vperm.xlu0 %48, %v25
  %v50 = vpop.permute.xlu0 %49
  %53 = vset.pattern.permute.xlu0 0
  %54 = vperm.xlu0 %53, %v26
  %v55 = vpop.permute.xlu0 %54
  %58 = vset.pattern.permute.xlu0 0
  %59 = vperm.xlu0 %58, %v27
  %v60 = vpop.permute.xlu0 %59
  %63 = vset.pattern.permute.xlu0 0
  %64 = vperm.xlu0 %63, %v28
  %v65 = vpop.permute.xlu0 %64
  %68 = vset.pattern.permute.xlu0 0
  %69 = vperm.xlu0 %68, %v29
  %v70 = vpop.permute.xlu0 %69
  %73 = vset.pattern.permute.xlu0 0
  %74 = vperm.xlu0 %73, %v30
  %v75 = vpop.permute.xlu0 %74
  %78 = vset.pattern.permute.xlu0 0
  %79 = vperm.xlu0 %78, %v31
  %v80 = vpop.permute.xlu0 %79
  %83 = vset.pattern.permute.xlu0 0
  %84 = vperm.xlu0 %83, %v32
  %v85 = vpop.permute.xlu0 %84
  %88 = vset.pattern.permute.xlu0 0
  %89 = vperm.xlu0 %88, %v33
  %v90 = vpop.permute.xlu0 %89
  %93 = vset.pattern.permute.xlu0 0
  %94 = vperm.xlu0 %93, %v34
  %v95 = vpop.permute.xlu0 %94
  %98 = vset.pattern.permute.xlu0 0
  %99 = vperm.xlu0 %98, %v35
  %v100 = vpop.permute.xlu0 %99
  %103 = vset.pattern.permute.xlu0 0
  %104 = vperm.xlu0 %103, %v36
  %v105 = vpop.permute.xlu0 %104
  %108 = vset.pattern.permute.xlu0 0
  %109 = vperm.xlu0 %108, %v37
  %v110 = vpop.permute.xlu0 %109
  %113 = vset.pattern.permute.xlu0 0
  %114 = vperm.xlu0 %113, %v38
  %v115 = vpop.permute.xlu0 %114
  %118 = vset.pattern.permute.xlu0 0
  %119 = vperm.xlu0 %118, %v39
  %v120 = vpop.permute.xlu0 %119
  %v123 = vlaneseq
  %v124 = vshrl.u32 %v123, 7
  %v125 = vsub.s32 0, %v124
  %v126 = vrot.slane %v40, %v125
  %v127 = vlaneseq
  %v128 = vshrl.u32 %v127, 7
  %v129 = vsub.s32 4, %v128
  %v130 = vrot.slane %v40, %v129
  %v133 = vlaneseq
  %v134 = vshrl.u32 %v133, 7
  %v135 = vsub.s32 0, %v134
  %v136 = vrot.slane %v126, %v135
  %v137 = vlaneseq
  %v138 = vshrl.u32 %v137, 7
  %v139 = vsub.s32 0, %v138
  %v140 = vrot.slane %v130, %v139
  %v141 = vmul.f32 %v45, %v136
  %v142 = vmul.f32 %v45, %v140
  %v143 = vmul.f32 %v50, %v136
  %v144 = vmul.f32 %v50, %v140
  %v145 = vmul.f32 %v55, %v136
  %v146 = vmul.f32 %v55, %v140
  %v147 = vmul.f32 %v60, %v136
  %v148 = vmul.f32 %v60, %v140
  %v149 = vmul.f32 %v65, %v136
  %v150 = vmul.f32 %v65, %v140
  %v151 = vmul.f32 %v70, %v136
  %v152 = vmul.f32 %v70, %v140
  %v153 = vmul.f32 %v75, %v136
  %v154 = vmul.f32 %v75, %v140
  %v155 = vmul.f32 %v80, %v136
  %v156 = vmul.f32 %v80, %v140
  %v157 = vmul.f32 %v85, %v136
  %v158 = vmul.f32 %v85, %v140
  %v159 = vmul.f32 %v90, %v136
  %v160 = vmul.f32 %v90, %v140
  %v161 = vmul.f32 %v95, %v136
  %v162 = vmul.f32 %v95, %v140
  %v163 = vmul.f32 %v100, %v136
  %v164 = vmul.f32 %v100, %v140
  %v165 = vmul.f32 %v105, %v136
  %v166 = vmul.f32 %v105, %v140
  %v167 = vmul.f32 %v110, %v136
  %v168 = vmul.f32 %v110, %v140
  %v169 = vmul.f32 %v115, %v136
  %v170 = vmul.f32 %v115, %v140
  %v171 = vmul.f32 %v120, %v136
  %v172 = vmul.f32 %v120, %v140
  %v174 = vlaneseq
  %v175 = vshrl.u32 %v174, 7
  %v176 = vsub.s32 0, %v175
  %v177 = vrot.slane %v41, %v176
  %v178 = vlaneseq
  %v179 = vshrl.u32 %v178, 7
  %v180 = vsub.s32 1, %v179
  %v181 = vrot.slane %v41, %v180
  %v184 = vadd.f32 %v177, %v141
  %v185 = vadd.f32 %v181, %v142
  %v186 = vadd.f32 %v177, %v143
  %v187 = vadd.f32 %v181, %v144
  %v188 = vadd.f32 %v177, %v145
  %v189 = vadd.f32 %v181, %v146
  %v190 = vadd.f32 %v177, %v147
  %v191 = vadd.f32 %v181, %v148
  %v192 = vadd.f32 %v177, %v149
  %v193 = vadd.f32 %v181, %v150
  %v194 = vadd.f32 %v177, %v151
  %v195 = vadd.f32 %v181, %v152
  %v196 = vadd.f32 %v177, %v153
  %v197 = vadd.f32 %v181, %v154
  %v198 = vadd.f32 %v177, %v155
  %v199 = vadd.f32 %v181, %v156
  %v200 = vadd.f32 %v177, %v157
  %v201 = vadd.f32 %v181, %v158
  %v202 = vadd.f32 %v177, %v159
  %v203 = vadd.f32 %v181, %v160
  %v204 = vadd.f32 %v177, %v161
  %v205 = vadd.f32 %v181, %v162
  %v206 = vadd.f32 %v177, %v163
  %v207 = vadd.f32 %v181, %v164
  %v208 = vadd.f32 %v177, %v165
  %v209 = vadd.f32 %v181, %v166
  %v210 = vadd.f32 %v177, %v167
  %v211 = vadd.f32 %v181, %v168
  %v212 = vadd.f32 %v177, %v169
  %v213 = vadd.f32 %v181, %v170
  %v214 = vadd.f32 %v177, %v171
  %v215 = vadd.f32 %v181, %v172
  %216 = vset.pattern.permute.xlu0 1
  %217 = vperm.xlu0 %216, %v24
  %v218 = vpop.permute.xlu0 %217
  %220 = vset.pattern.permute.xlu0 1
  %221 = vperm.xlu0 %220, %v25
  %v222 = vpop.permute.xlu0 %221
  %224 = vset.pattern.permute.xlu0 1
  %225 = vperm.xlu0 %224, %v26
  %v226 = vpop.permute.xlu0 %225
  %228 = vset.pattern.permute.xlu0 1
  %229 = vperm.xlu0 %228, %v27
  %v230 = vpop.permute.xlu0 %229
  %232 = vset.pattern.permute.xlu0 1
  %233 = vperm.xlu0 %232, %v28
  %v234 = vpop.permute.xlu0 %233
  %236 = vset.pattern.permute.xlu0 1
  %237 = vperm.xlu0 %236, %v29
  %v238 = vpop.permute.xlu0 %237
  %240 = vset.pattern.permute.xlu0 1
  %241 = vperm.xlu0 %240, %v30
  %v242 = vpop.permute.xlu0 %241
  %244 = vset.pattern.permute.xlu0 1
  %245 = vperm.xlu0 %244, %v31
  %v246 = vpop.permute.xlu0 %245
  %248 = vset.pattern.permute.xlu0 1
  %249 = vperm.xlu0 %248, %v32
  %v250 = vpop.permute.xlu0 %249
  %252 = vset.pattern.permute.xlu0 1
  %253 = vperm.xlu0 %252, %v33
  %v254 = vpop.permute.xlu0 %253
  %256 = vset.pattern.permute.xlu0 1
  %257 = vperm.xlu0 %256, %v34
  %v258 = vpop.permute.xlu0 %257
  %260 = vset.pattern.permute.xlu0 1
  %261 = vperm.xlu0 %260, %v35
  %v262 = vpop.permute.xlu0 %261
  %264 = vset.pattern.permute.xlu0 1
  %265 = vperm.xlu0 %264, %v36
  %v266 = vpop.permute.xlu0 %265
  %268 = vset.pattern.permute.xlu0 1
  %269 = vperm.xlu0 %268, %v37
  %v270 = vpop.permute.xlu0 %269
  %272 = vset.pattern.permute.xlu0 1
  %273 = vperm.xlu0 %272, %v38
  %v274 = vpop.permute.xlu0 %273
  %276 = vset.pattern.permute.xlu0 1
  %277 = vperm.xlu0 %276, %v39
  %v278 = vpop.permute.xlu0 %277
  %v280 = vlaneseq
  %v281 = vshrl.u32 %v280, 7
  %v282 = vsub.s32 1, %v281
  %v283 = vrot.slane %v40, %v282
  %v284 = vlaneseq
  %v285 = vshrl.u32 %v284, 7
  %v286 = vsub.s32 5, %v285
  %v287 = vrot.slane %v40, %v286
  %v290 = vlaneseq
  %v291 = vshrl.u32 %v290, 7
  %v292 = vsub.s32 1, %v291
  %v293 = vrot.slane %v283, %v292
  %v294 = vlaneseq
  %v295 = vshrl.u32 %v294, 7
  %v296 = vsub.s32 1, %v295
  %v297 = vrot.slane %v287, %v296
  %v298 = vmul.f32 %v218, %v293
  %v299 = vmul.f32 %v218, %v297
  %v300 = vmul.f32 %v222, %v293
  %v301 = vmul.f32 %v222, %v297
  %v302 = vmul.f32 %v226, %v293
  %v303 = vmul.f32 %v226, %v297
  %v304 = vmul.f32 %v230, %v293
  %v305 = vmul.f32 %v230, %v297
  %v306 = vmul.f32 %v234, %v293
  %v307 = vmul.f32 %v234, %v297
  %v308 = vmul.f32 %v238, %v293
  %v309 = vmul.f32 %v238, %v297
  %v310 = vmul.f32 %v242, %v293
  %v311 = vmul.f32 %v242, %v297
  %v312 = vmul.f32 %v246, %v293
  %v313 = vmul.f32 %v246, %v297
  %v314 = vmul.f32 %v250, %v293
  %v315 = vmul.f32 %v250, %v297
  %v316 = vmul.f32 %v254, %v293
  %v317 = vmul.f32 %v254, %v297
  %v318 = vmul.f32 %v258, %v293
  %v319 = vmul.f32 %v258, %v297
  %v320 = vmul.f32 %v262, %v293
  %v321 = vmul.f32 %v262, %v297
  %v322 = vmul.f32 %v266, %v293
  %v323 = vmul.f32 %v266, %v297
  %v324 = vmul.f32 %v270, %v293
  %v325 = vmul.f32 %v270, %v297
  %v326 = vmul.f32 %v274, %v293
  %v327 = vmul.f32 %v274, %v297
  %v328 = vmul.f32 %v278, %v293
  %v329 = vmul.f32 %v278, %v297
  %v330 = vadd.f32 %v184, %v298
  %v331 = vadd.f32 %v185, %v299
  %v332 = vadd.f32 %v186, %v300
  %v333 = vadd.f32 %v187, %v301
  %v334 = vadd.f32 %v188, %v302
  %v335 = vadd.f32 %v189, %v303
  %v336 = vadd.f32 %v190, %v304
  %v337 = vadd.f32 %v191, %v305
  %v338 = vadd.f32 %v192, %v306
  %v339 = vadd.f32 %v193, %v307
  %v340 = vadd.f32 %v194, %v308
  %v341 = vadd.f32 %v195, %v309
  %v342 = vadd.f32 %v196, %v310
  %v343 = vadd.f32 %v197, %v311
  %v344 = vadd.f32 %v198, %v312
  %v345 = vadd.f32 %v199, %v313
  %v346 = vadd.f32 %v200, %v314
  %v347 = vadd.f32 %v201, %v315
  %v348 = vadd.f32 %v202, %v316
  %v349 = vadd.f32 %v203, %v317
  %v350 = vadd.f32 %v204, %v318
  %v351 = vadd.f32 %v205, %v319
  %v352 = vadd.f32 %v206, %v320
  %v353 = vadd.f32 %v207, %v321
  %v354 = vadd.f32 %v208, %v322
  %v355 = vadd.f32 %v209, %v323
  %v356 = vadd.f32 %v210, %v324
  %v357 = vadd.f32 %v211, %v325
  %v358 = vadd.f32 %v212, %v326
  %v359 = vadd.f32 %v213, %v327
  %v360 = vadd.f32 %v214, %v328
  %v361 = vadd.f32 %v215, %v329
  %362 = vset.pattern.permute.xlu0 2
  %363 = vperm.xlu0 %362, %v24
  %v364 = vpop.permute.xlu0 %363
  %366 = vset.pattern.permute.xlu0 2
  %367 = vperm.xlu0 %366, %v25
  %v368 = vpop.permute.xlu0 %367
  %370 = vset.pattern.permute.xlu0 2
  %371 = vperm.xlu0 %370, %v26
  %v372 = vpop.permute.xlu0 %371
  %374 = vset.pattern.permute.xlu0 2
  %375 = vperm.xlu0 %374, %v27
  %v376 = vpop.permute.xlu0 %375
  %378 = vset.pattern.permute.xlu0 2
  %379 = vperm.xlu0 %378, %v28
  %v380 = vpop.permute.xlu0 %379
  %382 = vset.pattern.permute.xlu0 2
  %383 = vperm.xlu0 %382, %v29
  %v384 = vpop.permute.xlu0 %383
  %386 = vset.pattern.permute.xlu0 2
  %387 = vperm.xlu0 %386, %v30
  %v388 = vpop.permute.xlu0 %387
  %390 = vset.pattern.permute.xlu0 2
  %391 = vperm.xlu0 %390, %v31
  %v392 = vpop.permute.xlu0 %391
  %394 = vset.pattern.permute.xlu0 2
  %395 = vperm.xlu0 %394, %v32
  %v396 = vpop.permute.xlu0 %395
  %398 = vset.pattern.permute.xlu0 2
  %399 = vperm.xlu0 %398, %v33
  %v400 = vpop.permute.xlu0 %399
  %402 = vset.pattern.permute.xlu0 2
  %403 = vperm.xlu0 %402, %v34
  %v404 = vpop.permute.xlu0 %403
  %406 = vset.pattern.permute.xlu0 2
  %407 = vperm.xlu0 %406, %v35
  %v408 = vpop.permute.xlu0 %407
  %410 = vset.pattern.permute.xlu0 2
  %411 = vperm.xlu0 %410, %v36
  %v412 = vpop.permute.xlu0 %411
  %414 = vset.pattern.permute.xlu0 2
  %415 = vperm.xlu0 %414, %v37
  %v416 = vpop.permute.xlu0 %415
  %418 = vset.pattern.permute.xlu0 2
  %419 = vperm.xlu0 %418, %v38
  %v420 = vpop.permute.xlu0 %419
  %422 = vset.pattern.permute.xlu0 2
  %423 = vperm.xlu0 %422, %v39
  %v424 = vpop.permute.xlu0 %423
  %v426 = vlaneseq
  %v427 = vshrl.u32 %v426, 7
  %v428 = vsub.s32 2, %v427
  %v429 = vrot.slane %v40, %v428
  %v430 = vlaneseq
  %v431 = vshrl.u32 %v430, 7
  %v432 = vsub.s32 6, %v431
  %v433 = vrot.slane %v40, %v432
  %v436 = vlaneseq
  %v437 = vshrl.u32 %v436, 7
  %v438 = vsub.s32 2, %v437
  %v439 = vrot.slane %v429, %v438
  %v440 = vlaneseq
  %v441 = vshrl.u32 %v440, 7
  %v442 = vsub.s32 2, %v441
  %v443 = vrot.slane %v433, %v442
  %v444 = vmul.f32 %v364, %v439
  %v445 = vmul.f32 %v364, %v443
  %v446 = vmul.f32 %v368, %v439
  %v447 = vmul.f32 %v368, %v443
  %v448 = vmul.f32 %v372, %v439
  %v449 = vmul.f32 %v372, %v443
  %v450 = vmul.f32 %v376, %v439
  %v451 = vmul.f32 %v376, %v443
  %v452 = vmul.f32 %v380, %v439
  %v453 = vmul.f32 %v380, %v443
  %v454 = vmul.f32 %v384, %v439
  %v455 = vmul.f32 %v384, %v443
  %v456 = vmul.f32 %v388, %v439
  %v457 = vmul.f32 %v388, %v443
  %v458 = vmul.f32 %v392, %v439
  %v459 = vmul.f32 %v392, %v443
  %v460 = vmul.f32 %v396, %v439
  %v461 = vmul.f32 %v396, %v443
  %v462 = vmul.f32 %v400, %v439
  %v463 = vmul.f32 %v400, %v443
  %v464 = vmul.f32 %v404, %v439
  %v465 = vmul.f32 %v404, %v443
  %v466 = vmul.f32 %v408, %v439
  %v467 = vmul.f32 %v408, %v443
  %v468 = vmul.f32 %v412, %v439
  %v469 = vmul.f32 %v412, %v443
  %v470 = vmul.f32 %v416, %v439
  %v471 = vmul.f32 %v416, %v443
  %v472 = vmul.f32 %v420, %v439
  %v473 = vmul.f32 %v420, %v443
  %v474 = vmul.f32 %v424, %v439
  %v475 = vmul.f32 %v424, %v443
  %v476 = vadd.f32 %v330, %v444
  %v477 = vadd.f32 %v331, %v445
  %v478 = vadd.f32 %v332, %v446
  %v479 = vadd.f32 %v333, %v447
  %v480 = vadd.f32 %v334, %v448
  %v481 = vadd.f32 %v335, %v449
  %v482 = vadd.f32 %v336, %v450
  %v483 = vadd.f32 %v337, %v451
  %v484 = vadd.f32 %v338, %v452
  %v485 = vadd.f32 %v339, %v453
  %v486 = vadd.f32 %v340, %v454
  %v487 = vadd.f32 %v341, %v455
  %v488 = vadd.f32 %v342, %v456
  %v489 = vadd.f32 %v343, %v457
  %v490 = vadd.f32 %v344, %v458
  %v491 = vadd.f32 %v345, %v459
  %v492 = vadd.f32 %v346, %v460
  %v493 = vadd.f32 %v347, %v461
  %v494 = vadd.f32 %v348, %v462
  %v495 = vadd.f32 %v349, %v463
  %v496 = vadd.f32 %v350, %v464
  %v497 = vadd.f32 %v351, %v465
  %v498 = vadd.f32 %v352, %v466
  %v499 = vadd.f32 %v353, %v467
  %v500 = vadd.f32 %v354, %v468
  %v501 = vadd.f32 %v355, %v469
  %v502 = vadd.f32 %v356, %v470
  %v503 = vadd.f32 %v357, %v471
  %v504 = vadd.f32 %v358, %v472
  %v505 = vadd.f32 %v359, %v473
  %v506 = vadd.f32 %v360, %v474
  %v507 = vadd.f32 %v361, %v475
  %v508 = vmax.f32 %v476, 0.0
  %v509 = vmax.f32 %v477, 0.0
  %v510 = vmax.f32 %v478, 0.0
  %v511 = vmax.f32 %v479, 0.0
  %v512 = vmax.f32 %v480, 0.0
  %v513 = vmax.f32 %v481, 0.0
  %v514 = vmax.f32 %v482, 0.0
  %v515 = vmax.f32 %v483, 0.0
  %v516 = vmax.f32 %v484, 0.0
  %v517 = vmax.f32 %v485, 0.0
  %v518 = vmax.f32 %v486, 0.0
  %v519 = vmax.f32 %v487, 0.0
  %v520 = vmax.f32 %v488, 0.0
  %v521 = vmax.f32 %v489, 0.0
  %v522 = vmax.f32 %v490, 0.0
  %v523 = vmax.f32 %v491, 0.0
  %v524 = vmax.f32 %v492, 0.0
  %v525 = vmax.f32 %v493, 0.0
  %v526 = vmax.f32 %v494, 0.0
  %v527 = vmax.f32 %v495, 0.0
  %v528 = vmax.f32 %v496, 0.0
  %v529 = vmax.f32 %v497, 0.0
  %v530 = vmax.f32 %v498, 0.0
  %v531 = vmax.f32 %v499, 0.0
  %v532 = vmax.f32 %v500, 0.0
  %v533 = vmax.f32 %v501, 0.0
  %v534 = vmax.f32 %v502, 0.0
  %v535 = vmax.f32 %v503, 0.0
  %v536 = vmax.f32 %v504, 0.0
  %v537 = vmax.f32 %v505, 0.0
  %v538 = vmax.f32 %v506, 0.0
  %v539 = vmax.f32 %v507, 0.0
  %v540 = vpack.c.bf16 %v510, %v508
  %v541 = vpack.c.bf16 %v511, %v509
  %v542 = vpack.c.bf16 %v514, %v512
  %v543 = vpack.c.bf16 %v515, %v513
  %v544 = vpack.c.bf16 %v518, %v516
  %v545 = vpack.c.bf16 %v519, %v517
  %v546 = vpack.c.bf16 %v522, %v520
  %v547 = vpack.c.bf16 %v523, %v521
  %v548 = vpack.c.bf16 %v526, %v524
  %v549 = vpack.c.bf16 %v527, %v525
  %v550 = vpack.c.bf16 %v530, %v528
  %v551 = vpack.c.bf16 %v531, %v529
  %v552 = vpack.c.bf16 %v534, %v532
  %v553 = vpack.c.bf16 %v535, %v533
  %v554 = vpack.c.bf16 %v538, %v536
  %v555 = vpack.c.bf16 %v539, %v537
  %v556 = vld [vmem:[%s4] sm:$0xff]
  %v557 = vld [vmem:[%s4 + $0x8] sm:$0xf]
  %v558 = vld [vmem:[%s4 + $0xc] sm:$0xff]
  %v559 = vld [vmem:[%s4 + $0x14] sm:$0xf]
  %v560 = vld [vmem:[%s4 + $0x18] sm:$0xff]
  %v561 = vld [vmem:[%s4 + $0x20] sm:$0xf]
  %v562 = vld [vmem:[%s4 + $0x24] sm:$0xff]
  %v563 = vld [vmem:[%s4 + $0x2c] sm:$0xf]
  %v564 = vld [vmem:[%s4 + $0x30] sm:$0xff]
  %v565 = vld [vmem:[%s4 + $0x38] sm:$0xf]
  %v566 = vld [vmem:[%s4 + $0x3c] sm:$0xff]
  %v567 = vld [vmem:[%s4 + $0x44] sm:$0xf]
  %v568 = vld [vmem:[%s4 + $0x48] sm:$0xff]
  %v569 = vld [vmem:[%s4 + $0x50] sm:$0xf]
  %v570 = vld [vmem:[%s4 + $0x54] sm:$0xff]
  %v571 = vld [vmem:[%s4 + $0x5c] sm:$0xf]
  %v572 = vld [vmem:[%s4 + $0x60] sm:$0xff]
  %v573 = vld [vmem:[%s4 + $0x68] sm:$0xf]
  %v574 = vld [vmem:[%s4 + $0x6c] sm:$0xff]
  %v575 = vld [vmem:[%s4 + $0x74] sm:$0xf]
  %v576 = vld [vmem:[%s4 + $0x78] sm:$0xff]
  %v577 = vld [vmem:[%s4 + $0x80] sm:$0xf]
  %v578 = vld [vmem:[%s4 + $0x84] sm:$0xff]
  %v579 = vld [vmem:[%s4 + $0x8c] sm:$0xf]
  %v580 = vld [vmem:[%s4 + $0x90] sm:$0xff]
  %v581 = vld [vmem:[%s4 + $0x98] sm:$0xf]
  %v582 = vld [vmem:[%s4 + $0x9c] sm:$0xff]
  %v583 = vld [vmem:[%s4 + $0xa4] sm:$0xf]
  %v584 = vld [vmem:[%s4 + $0xa8] sm:$0xff]
  %v585 = vld [vmem:[%s4 + $0xb0] sm:$0xf]
  %v586 = vld [vmem:[%s4 + $0xb4] sm:$0xff]
  %v587 = vld [vmem:[%s4 + $0xbc] sm:$0xf]
  %v588 = vld [vmem:[%s4 + $0xc0] sm:$0xff]
  %v589 = vld [vmem:[%s4 + $0xc8] sm:$0xf]
  %v590 = vld [vmem:[%s4 + $0xcc] sm:$0xff]
  %v591 = vld [vmem:[%s4 + $0xd4] sm:$0xf]
  %v592 = vld [vmem:[%s4 + $0xd8] sm:$0xff]
  %v593 = vld [vmem:[%s4 + $0xe0] sm:$0xf]
  %v594 = vld [vmem:[%s4 + $0xe4] sm:$0xff]
  %v595 = vld [vmem:[%s4 + $0xec] sm:$0xf]
  %v596 = vld [vmem:[%s4 + $0xf0] sm:$0xff]
  %v597 = vld [vmem:[%s4 + $0xf8] sm:$0xf]
  %v598 = vld [vmem:[%s4 + $0xfc] sm:$0xff]
  %v599 = vld [vmem:[%s4 + $0x104] sm:$0xf]
  %v600 = vld [vmem:[%s4 + $0x108] sm:$0xff]
  %v601 = vld [vmem:[%s4 + $0x110] sm:$0xf]
  %v602 = vld [vmem:[%s4 + $0x114] sm:$0xff]
  %v603 = vld [vmem:[%s4 + $0x11c] sm:$0xf]
  %v604 = vld [vmem:[%s4 + $0x120] sm:$0xff]
  %v605 = vld [vmem:[%s4 + $0x128] sm:$0xf]
  %v606 = vld [vmem:[%s4 + $0x12c] sm:$0xff]
  %v607 = vld [vmem:[%s4 + $0x134] sm:$0xf]
  %v608 = vld [vmem:[%s4 + $0x138] sm:$0xff]
  %v609 = vld [vmem:[%s4 + $0x140] sm:$0xf]
  %v610 = vld [vmem:[%s4 + $0x144] sm:$0xff]
  %v611 = vld [vmem:[%s4 + $0x14c] sm:$0xf]
  %v612 = vld [vmem:[%s4 + $0x150] sm:$0xff]
  %v613 = vld [vmem:[%s4 + $0x158] sm:$0xf]
  %v614 = vld [vmem:[%s4 + $0x15c] sm:$0xff]
  %v615 = vld [vmem:[%s4 + $0x164] sm:$0xf]
  %v616 = vld [vmem:[%s4 + $0x168] sm:$0xff]
  %v617 = vld [vmem:[%s4 + $0x170] sm:$0xf]
  %v618 = vld [vmem:[%s4 + $0x174] sm:$0xff]
  %v619 = vld [vmem:[%s4 + $0x17c] sm:$0xf]
  %v620 = vld [vmem:[%s5] sm:$0x7]
  %v622 = vlaneseq
  %v623 = vshrl.u32 %v622, 7
  %v624 = vsub.s32 0, %v623
  %v625 = vrot.slane %v620, %v624
  %v626 = vlaneseq
  %v627 = vshrl.u32 %v626, 7
  %v628 = vsub.s32 1, %v627
  %v629 = vrot.slane %v620, %v628
  %v630 = vlaneseq
  %v631 = vshrl.u32 %v630, 7
  %v632 = vsub.s32 2, %v631
  %v633 = vrot.slane %v620, %v632
  %v701 = vunpack.c.l.b16 %v556
  %v702 = vunpack.c.h.b16 %v556
  %v703 = vunpack.c.l.b16 %v557
  %v704 = vunpack.c.l.b16 %v558
  %v705 = vunpack.c.h.b16 %v558
  %v706 = vunpack.c.l.b16 %v559
  %v707 = vunpack.c.l.b16 %v560
  %v708 = vunpack.c.h.b16 %v560
  %v709 = vunpack.c.l.b16 %v561
  %v710 = vunpack.c.l.b16 %v562
  %v711 = vunpack.c.h.b16 %v562
  %v712 = vunpack.c.l.b16 %v563
  %v713 = vunpack.c.l.b16 %v564
  %v714 = vunpack.c.h.b16 %v564
  %v715 = vunpack.c.l.b16 %v565
  %v716 = vunpack.c.l.b16 %v566
  %v717 = vunpack.c.h.b16 %v566
  %v718 = vunpack.c.l.b16 %v567
  %v719 = vunpack.c.l.b16 %v568
  %v720 = vunpack.c.h.b16 %v568
  %v721 = vunpack.c.l.b16 %v569
  %v722 = vunpack.c.l.b16 %v570
  %v723 = vunpack.c.h.b16 %v570
  %v724 = vunpack.c.l.b16 %v571
  %v725 = vunpack.c.l.b16 %v572
  %v726 = vunpack.c.h.b16 %v572
  %v727 = vunpack.c.l.b16 %v573
  %v728 = vunpack.c.l.b16 %v574
  %v729 = vunpack.c.h.b16 %v574
  %v730 = vunpack.c.l.b16 %v575
  %v731 = vunpack.c.l.b16 %v576
  %v732 = vunpack.c.h.b16 %v576
  %v733 = vunpack.c.l.b16 %v577
  %v734 = vunpack.c.l.b16 %v578
  %v735 = vunpack.c.h.b16 %v578
  %v736 = vunpack.c.l.b16 %v579
  %v737 = vunpack.c.l.b16 %v580
  %v738 = vunpack.c.h.b16 %v580
  %v739 = vunpack.c.l.b16 %v581
  %v740 = vunpack.c.l.b16 %v582
  %v741 = vunpack.c.h.b16 %v582
  %v742 = vunpack.c.l.b16 %v583
  %v743 = vunpack.c.l.b16 %v584
  %v744 = vunpack.c.h.b16 %v584
  %v745 = vunpack.c.l.b16 %v585
  %v746 = vunpack.c.l.b16 %v586
  %v747 = vunpack.c.h.b16 %v586
  %v748 = vunpack.c.l.b16 %v587
  %v749 = vunpack.c.l.b16 %v588
  %v750 = vunpack.c.h.b16 %v588
  %v751 = vunpack.c.l.b16 %v589
  %v752 = vunpack.c.l.b16 %v590
  %v753 = vunpack.c.h.b16 %v590
  %v754 = vunpack.c.l.b16 %v591
  %v755 = vunpack.c.l.b16 %v592
  %v756 = vunpack.c.h.b16 %v592
  %v757 = vunpack.c.l.b16 %v593
  %v758 = vunpack.c.l.b16 %v594
  %v759 = vunpack.c.h.b16 %v594
  %v760 = vunpack.c.l.b16 %v595
  %v761 = vunpack.c.l.b16 %v596
  %v762 = vunpack.c.h.b16 %v596
  %v763 = vunpack.c.l.b16 %v597
  %v764 = vunpack.c.l.b16 %v598
  %v765 = vunpack.c.h.b16 %v598
  %v766 = vunpack.c.l.b16 %v599
  %v767 = vunpack.c.l.b16 %v600
  %v768 = vunpack.c.h.b16 %v600
  %v769 = vunpack.c.l.b16 %v601
  %v770 = vunpack.c.l.b16 %v602
  %v771 = vunpack.c.h.b16 %v602
  %v772 = vunpack.c.l.b16 %v603
  %v773 = vunpack.c.l.b16 %v604
  %v774 = vunpack.c.h.b16 %v604
  %v775 = vunpack.c.l.b16 %v605
  %v776 = vunpack.c.l.b16 %v606
  %v777 = vunpack.c.h.b16 %v606
  %v778 = vunpack.c.l.b16 %v607
  %v779 = vunpack.c.l.b16 %v608
  %v780 = vunpack.c.h.b16 %v608
  %v781 = vunpack.c.l.b16 %v609
  %v782 = vunpack.c.l.b16 %v610
  %v783 = vunpack.c.h.b16 %v610
  %v784 = vunpack.c.l.b16 %v611
  %v785 = vunpack.c.l.b16 %v612
  %v786 = vunpack.c.h.b16 %v612
  %v787 = vunpack.c.l.b16 %v613
  %v788 = vunpack.c.l.b16 %v614
  %v789 = vunpack.c.h.b16 %v614
  %v790 = vunpack.c.l.b16 %v615
  %v791 = vunpack.c.l.b16 %v616
  %v792 = vunpack.c.h.b16 %v616
  %v793 = vunpack.c.l.b16 %v617
  %v794 = vunpack.c.l.b16 %v618
  %v795 = vunpack.c.h.b16 %v618
  %v796 = vunpack.c.l.b16 %v619
  %v797 = vpack.c.b16 %v704, %v701
  %v798 = vpack.c.b16 %v705, %v702
  %v799 = vpack.c.b16 %v706, %v703
  %v800 = vpack.c.b16 %v710, %v707
  %v801 = vpack.c.b16 %v711, %v708
  %v802 = vpack.c.b16 %v712, %v709
  %v803 = vpack.c.b16 %v716, %v713
  %v804 = vpack.c.b16 %v717, %v714
  %v805 = vpack.c.b16 %v718, %v715
  %v806 = vpack.c.b16 %v722, %v719
  %v807 = vpack.c.b16 %v723, %v720
  %v808 = vpack.c.b16 %v724, %v721
  %v809 = vpack.c.b16 %v728, %v725
  %v810 = vpack.c.b16 %v729, %v726
  %v811 = vpack.c.b16 %v730, %v727
  %v812 = vpack.c.b16 %v734, %v731
  %v813 = vpack.c.b16 %v735, %v732
  %v814 = vpack.c.b16 %v736, %v733
  %v815 = vpack.c.b16 %v740, %v737
  %v816 = vpack.c.b16 %v741, %v738
  %v817 = vpack.c.b16 %v742, %v739
  %v818 = vpack.c.b16 %v746, %v743
  %v819 = vpack.c.b16 %v747, %v744
  %v820 = vpack.c.b16 %v748, %v745
  %v821 = vpack.c.b16 %v752, %v749
  %v822 = vpack.c.b16 %v753, %v750
  %v823 = vpack.c.b16 %v754, %v751
  %v824 = vpack.c.b16 %v758, %v755
  %v825 = vpack.c.b16 %v759, %v756
  %v826 = vpack.c.b16 %v760, %v757
  %v827 = vpack.c.b16 %v764, %v761
  %v828 = vpack.c.b16 %v765, %v762
  %v829 = vpack.c.b16 %v766, %v763
  %v830 = vpack.c.b16 %v770, %v767
  %v831 = vpack.c.b16 %v771, %v768
  %v832 = vpack.c.b16 %v772, %v769
  %v833 = vpack.c.b16 %v776, %v773
  %v834 = vpack.c.b16 %v777, %v774
  %v835 = vpack.c.b16 %v778, %v775
  %v836 = vpack.c.b16 %v782, %v779
  %v837 = vpack.c.b16 %v783, %v780
  %v838 = vpack.c.b16 %v784, %v781
  %v839 = vpack.c.b16 %v788, %v785
  %v840 = vpack.c.b16 %v789, %v786
  %v841 = vpack.c.b16 %v790, %v787
  %v842 = vpack.c.b16 %v794, %v791
  %v843 = vpack.c.b16 %v795, %v792
  %v844 = vpack.c.b16 %v796, %v793
  %893 = vmatprep.subr.bf16.mxu0 %v798
  %894 = vmatpush1.bf16.msra.mxu0 %v797
  %895 = vmatprep.subr.bf16.mxu0 %v801
  %896 = vmatpush1.bf16.msra.mxu0 %v800
  %897 = vmatprep.subr.bf16.mxu0 %v804
  %898 = vmatpush1.bf16.msra.mxu0 %v803
  %899 = vmatprep.subr.bf16.mxu0 %v807
  %900 = vmatpush1.bf16.msra.mxu0 %v806
  %901 = vmatprep.subr.bf16.mxu0 %v810
  %902 = vmatpush1.bf16.msra.mxu0 %v809
  %903 = vmatprep.subr.bf16.mxu0 %v813
  %904 = vmatpush1.bf16.msra.mxu0 %v812
  %905 = vmatprep.subr.bf16.mxu0 %v816
  %906 = vmatpush1.bf16.msra.mxu0 %v815
  %907 = vmatprep.subr.bf16.mxu0 %v819
  %908 = vmatpush1.bf16.msra.mxu0 %v818
  %909 = vmatprep.subr.bf16.mxu0 %v822
  %910 = vmatpush1.bf16.msra.mxu0 %v821
  %911 = vmatprep.subr.bf16.mxu0 %v825
  %912 = vmatpush1.bf16.msra.mxu0 %v824
  %913 = vmatprep.subr.bf16.mxu0 %v828
  %914 = vmatpush1.bf16.msra.mxu0 %v827
  %915 = vmatprep.subr.bf16.mxu0 %v831
  %916 = vmatpush1.bf16.msra.mxu0 %v830
  %917 = vmatprep.subr.bf16.mxu0 %v834
  %918 = vmatpush1.bf16.msra.mxu0 %v833
  %919 = vmatprep.subr.bf16.mxu0 %v837
  %920 = vmatpush1.bf16.msra.mxu0 %v836
  %921 = vmatprep.subr.bf16.mxu0 %v840
  %922 = vmatpush1.bf16.msra.mxu0 %v839
  %923 = vmatprep.subr.bf16.mxu0 %v843
  %924 = vmatpush1.bf16.msra.mxu0 %v842
  %925 = vmatprep.mubr.bf16.mxu0 %v541
  %926 = vmatmul.mubr.bf16.gmra.mrb[0].mxu0 %v540
  %v927 = vpop.f32.mrb[0].mxu0
  %v928 = vadd.f32 %v625, %v927
  %v929 = vpop.f32.mrb[0].mxu0
  %v930 = vadd.f32 %v629, %v929
  %v931 = vpop.f32.mrb[0].mxu0
  %v932 = vadd.f32 %v625, %v931
  %v933 = vpop.f32.mrb[0].mxu0
  %v934 = vadd.f32 %v629, %v933
  %935 = vmatprep.mubr.bf16.mxu0 %v543
  %936 = vmatmul.mubr.bf16.gmra.mrb[0].mxu0 %v542
  %v937 = vpop.f32.mrb[0].mxu0
  %v938 = vadd.f32 %v625, %v937
  %v939 = vpop.f32.mrb[0].mxu0
  %v940 = vadd.f32 %v629, %v939
  %v941 = vpop.f32.mrb[0].mxu0
  %v942 = vadd.f32 %v625, %v941
  %v943 = vpop.f32.mrb[0].mxu0
  %v944 = vadd.f32 %v629, %v943
  %945 = vmatprep.mubr.bf16.mxu0 %v545
  %946 = vmatmul.mubr.bf16.gmra.mrb[0].mxu0 %v544
  %v947 = vpop.f32.mrb[0].mxu0
  %v948 = vadd.f32 %v625, %v947
  %v949 = vpop.f32.mrb[0].mxu0
  %v950 = vadd.f32 %v629, %v949
  %v951 = vpop.f32.mrb[0].mxu0
  %v952 = vadd.f32 %v625, %v951
  %v953 = vpop.f32.mrb[0].mxu0
  %v954 = vadd.f32 %v629, %v953
  %955 = vmatprep.mubr.bf16.mxu0 %v547
  %956 = vmatmul.mubr.bf16.gmra.mrb[0].mxu0 %v546
  %v957 = vpop.f32.mrb[0].mxu0
  %v958 = vadd.f32 %v625, %v957
  %v959 = vpop.f32.mrb[0].mxu0
  %v960 = vadd.f32 %v629, %v959
  %v961 = vpop.f32.mrb[0].mxu0
  %v962 = vadd.f32 %v625, %v961
  %v963 = vpop.f32.mrb[0].mxu0
  %v964 = vadd.f32 %v629, %v963
  %965 = vmatprep.mubr.bf16.mxu0 %v549
  %966 = vmatmul.mubr.bf16.gmra.mrb[0].mxu0 %v548
  %v967 = vpop.f32.mrb[0].mxu0
  %v968 = vadd.f32 %v625, %v967
  %v969 = vpop.f32.mrb[0].mxu0
  %v970 = vadd.f32 %v629, %v969
  %v971 = vpop.f32.mrb[0].mxu0
  %v972 = vadd.f32 %v625, %v971
  %v973 = vpop.f32.mrb[0].mxu0
  %v974 = vadd.f32 %v629, %v973
  %975 = vmatprep.mubr.bf16.mxu0 %v551
  %976 = vmatmul.mubr.bf16.gmra.mrb[0].mxu0 %v550
  %v977 = vpop.f32.mrb[0].mxu0
  %v978 = vadd.f32 %v625, %v977
  %v979 = vpop.f32.mrb[0].mxu0
  %v980 = vadd.f32 %v629, %v979
  %v981 = vpop.f32.mrb[0].mxu0
  %v982 = vadd.f32 %v625, %v981
  %v983 = vpop.f32.mrb[0].mxu0
  %v984 = vadd.f32 %v629, %v983
  %985 = vmatprep.mubr.bf16.mxu0 %v553
  %986 = vmatmul.mubr.bf16.gmra.mrb[0].mxu0 %v552
  %v987 = vpop.f32.mrb[0].mxu0
  %v988 = vadd.f32 %v625, %v987
  %v989 = vpop.f32.mrb[0].mxu0
  %v990 = vadd.f32 %v629, %v989
  %v991 = vpop.f32.mrb[0].mxu0
  %v992 = vadd.f32 %v625, %v991
  %v993 = vpop.f32.mrb[0].mxu0
  %v994 = vadd.f32 %v629, %v993
  %995 = vmatprep.mubr.bf16.mxu0 %v555
  %996 = vmatmul.mubr.bf16.gmra.mrb[0].mxu0 %v554
  %v997 = vpop.f32.mrb[0].mxu0
  %v998 = vadd.f32 %v625, %v997
  %v999 = vpop.f32.mrb[0].mxu0
  %v1000 = vadd.f32 %v629, %v999
  %v1001 = vpop.f32.mrb[0].mxu0
  %v1002 = vadd.f32 %v625, %v1001
  %v1003 = vpop.f32.mrb[0].mxu0
  %v1004 = vadd.f32 %v629, %v1003
  %1005 = vdwg.mxu0
  %1006 = vmatprep.subr.bf16.mxu0 0
  %1007 = vmatpush1.bf16.msra.mxu0 %v799
  %1008 = vmatprep.subr.bf16.mxu0 0
  %1009 = vmatpush1.bf16.msra.mxu0 %v802
  %1010 = vmatprep.subr.bf16.mxu0 0
  %1011 = vmatpush1.bf16.msra.mxu0 %v805
  %1012 = vmatprep.subr.bf16.mxu0 0
  %1013 = vmatpush1.bf16.msra.mxu0 %v808
  %1014 = vmatprep.subr.bf16.mxu0 0
  %1015 = vmatpush1.bf16.msra.mxu0 %v811
  %1016 = vmatprep.subr.bf16.mxu0 0
  %1017 = vmatpush1.bf16.msra.mxu0 %v814
  %1018 = vmatprep.subr.bf16.mxu0 0
  %1019 = vmatpush1.bf16.msra.mxu0 %v817
  %1020 = vmatprep.subr.bf16.mxu0 0
  %1021 = vmatpush1.bf16.msra.mxu0 %v820
  %1022 = vmatprep.subr.bf16.mxu0 0
  %1023 = vmatpush1.bf16.msra.mxu0 %v823
  %1024 = vmatprep.subr.bf16.mxu0 0
  %1025 = vmatpush1.bf16.msra.mxu0 %v826
  %1026 = vmatprep.subr.bf16.mxu0 0
  %1027 = vmatpush1.bf16.msra.mxu0 %v829
  %1028 = vmatprep.subr.bf16.mxu0 0
  %1029 = vmatpush1.bf16.msra.mxu0 %v832
  %1030 = vmatprep.subr.bf16.mxu0 0
  %1031 = vmatpush1.bf16.msra.mxu0 %v835
  %1032 = vmatprep.subr.bf16.mxu0 0
  %1033 = vmatpush1.bf16.msra.mxu0 %v838
  %1034 = vmatprep.subr.bf16.mxu0 0
  %1035 = vmatpush1.bf16.msra.mxu0 %v841
  %1036 = vmatprep.subr.bf16.mxu0 0
  %1037 = vmatpush1.bf16.msra.mxu0 %v844
  %1038 = vmatprep.mubr.bf16.mxu0 %v541
  %1039 = vmatmul.mubr.bf16.gmra.mrb[0].mxu0 %v540
  %v1040 = vpop.f32.mrb[0].mxu0
  %v1041 = vadd.f32 %v633, %v1040
  %v1042 = vpop.f32.mrb[0].mxu0
  %v1043 = vpop.f32.mrb[0].mxu0
  %v1044 = vadd.f32 %v633, %v1043
  %v1045 = vpop.f32.mrb[0].mxu0
  %1046 = vmatprep.mubr.bf16.mxu0 %v543
  %1047 = vmatmul.mubr.bf16.gmra.mrb[0].mxu0 %v542
  %v1048 = vpop.f32.mrb[0].mxu0
  %v1049 = vadd.f32 %v633, %v1048
  %v1050 = vpop.f32.mrb[0].mxu0
  %v1051 = vpop.f32.mrb[0].mxu0
  %v1052 = vadd.f32 %v633, %v1051
  %v1053 = vpop.f32.mrb[0].mxu0
  %1054 = vmatprep.mubr.bf16.mxu0 %v545
  %1055 = vmatmul.mubr.bf16.gmra.mrb[0].mxu0 %v544
  %v1056 = vpop.f32.mrb[0].mxu0
  %v1057 = vadd.f32 %v633, %v1056
  %v1058 = vpop.f32.mrb[0].mxu0
  %v1059 = vpop.f32.mrb[0].mxu0
  %v1060 = vadd.f32 %v633, %v1059
  %v1061 = vpop.f32.mrb[0].mxu0
  %1062 = vmatprep.mubr.bf16.mxu0 %v547
  %1063 = vmatmul.mubr.bf16.gmra.mrb[0].mxu0 %v546
  %v1064 = vpop.f32.mrb[0].mxu0
  %v1065 = vadd.f32 %v633, %v1064
  %v1066 = vpop.f32.mrb[0].mxu0
  %v1067 = vpop.f32.mrb[0].mxu0
  %v1068 = vadd.f32 %v633, %v1067
  %v1069 = vpop.f32.mrb[0].mxu0
  %1070 = vmatprep.mubr.bf16.mxu0 %v549
  %1071 = vmatmul.mubr.bf16.gmra.mrb[0].mxu0 %v548
  %v1072 = vpop.f32.mrb[0].mxu0
  %v1073 = vadd.f32 %v633, %v1072
  %v1074 = vpop.f32.mrb[0].mxu0
  %v1075 = vpop.f32.mrb[0].mxu0
  %v1076 = vadd.f32 %v633, %v1075
  %v1077 = vpop.f32.mrb[0].mxu0
  %1078 = vmatprep.mubr.bf16.mxu0 %v551
  %1079 = vmatmul.mubr.bf16.gmra.mrb[0].mxu0 %v550
  %v1080 = vpop.f32.mrb[0].mxu0
  %v1081 = vadd.f32 %v633, %v1080
  %v1082 = vpop.f32.mrb[0].mxu0
  %v1083 = vpop.f32.mrb[0].mxu0
  %v1084 = vadd.f32 %v633, %v1083
  %v1085 = vpop.f32.mrb[0].mxu0
  %1086 = vmatprep.mubr.bf16.mxu0 %v553
  %1087 = vmatmul.mubr.bf16.gmra.mrb[0].mxu0 %v552
  %v1088 = vpop.f32.mrb[0].mxu0
  %v1089 = vadd.f32 %v633, %v1088
  %v1090 = vpop.f32.mrb[0].mxu0
  %v1091 = vpop.f32.mrb[0].mxu0
  %v1092 = vadd.f32 %v633, %v1091
  %v1093 = vpop.f32.mrb[0].mxu0
  %1094 = vmatprep.mubr.bf16.mxu0 %v555
  %1095 = vmatmul.mubr.bf16.gmra.mrb[0].mxu0 %v554
  %v1096 = vpop.f32.mrb[0].mxu0
  %v1097 = vadd.f32 %v633, %v1096
  %v1098 = vpop.f32.mrb[0].mxu0
  %v1099 = vpop.f32.mrb[0].mxu0
  %v1100 = vadd.f32 %v633, %v1099
  %v1101 = vpop.f32.mrb[0].mxu0
  %1102 = vdwg.mxu0
  %v1103 = vld [vmem:[%s1] sm:$0xf]
  %v1104 = vld [vmem:[%s1 + $0x4] sm:$0xf]
  %v1105 = vld [vmem:[%s1 + $0x8] sm:$0xf]
  %v1106 = vld [vmem:[%s1 + $0xc] sm:$0xf]
  %v1107 = vld [vmem:[%s1 + $0x10] sm:$0xf]
  %v1108 = vld [vmem:[%s1 + $0x14] sm:$0xf]
  %v1109 = vld [vmem:[%s1 + $0x18] sm:$0xf]
  %v1110 = vld [vmem:[%s1 + $0x1c] sm:$0xf]
  %v1111 = vld [vmem:[%s1 + $0x20] sm:$0xf]
  %v1112 = vld [vmem:[%s1 + $0x24] sm:$0xf]
  %v1113 = vld [vmem:[%s1 + $0x28] sm:$0xf]
  %v1114 = vld [vmem:[%s1 + $0x2c] sm:$0xf]
  %v1115 = vld [vmem:[%s1 + $0x30] sm:$0xf]
  %v1116 = vld [vmem:[%s1 + $0x34] sm:$0xf]
  %v1117 = vld [vmem:[%s1 + $0x38] sm:$0xf]
  %v1118 = vld [vmem:[%s1 + $0x3c] sm:$0xf]
  %v1119 = vunpack.c.l.bf16 %v1103
  %v1120 = vunpack.c.l.bf16 %v1104
  %v1121 = vunpack.c.l.bf16 %v1105
  %v1122 = vunpack.c.l.bf16 %v1106
  %v1123 = vunpack.c.l.bf16 %v1107
  %v1124 = vunpack.c.l.bf16 %v1108
  %v1125 = vunpack.c.l.bf16 %v1109
  %v1126 = vunpack.c.l.bf16 %v1110
  %v1127 = vunpack.c.l.bf16 %v1111
  %v1128 = vunpack.c.l.bf16 %v1112
  %v1129 = vunpack.c.l.bf16 %v1113
  %v1130 = vunpack.c.l.bf16 %v1114
  %v1131 = vunpack.c.l.bf16 %v1115
  %v1132 = vunpack.c.l.bf16 %v1116
  %v1133 = vunpack.c.l.bf16 %v1117
  %v1134 = vunpack.c.l.bf16 %v1118
  %v1135 = vmul.f32 %v1119, %v928
  %v1136 = vmul.f32 %v1120, %v932
  %v1137 = vmul.f32 %v1121, %v938
  %v1138 = vmul.f32 %v1122, %v942
  %v1139 = vmul.f32 %v1123, %v948
  %v1140 = vmul.f32 %v1124, %v952
  %v1141 = vmul.f32 %v1125, %v958
  %v1142 = vmul.f32 %v1126, %v962
  %v1143 = vmul.f32 %v1127, %v968
  %v1144 = vmul.f32 %v1128, %v972
  %v1145 = vmul.f32 %v1129, %v978
  %v1146 = vmul.f32 %v1130, %v982
  %v1147 = vmul.f32 %v1131, %v988
  %v1148 = vmul.f32 %v1132, %v992
  %v1149 = vmul.f32 %v1133, %v998
  %v1150 = vmul.f32 %v1134, %v1002
  %vm1151 = vcmask 588800
  %v1152 = vsel %vm1151, %v1135, 0.0
  %1153 = vadd.xlane.f32.xlu0 %v1152
  %v1154 = vpop.xlane.xlu0 %1153
  %v1155 = vsel %vm1151, %v1136, 0.0
  %1156 = vadd.xlane.f32.xlu0 %v1155
  %v1157 = vpop.xlane.xlu0 %1156
  %v1158 = vsel %vm1151, %v1137, 0.0
  %1159 = vadd.xlane.f32.xlu0 %v1158
  %v1160 = vpop.xlane.xlu0 %1159
  %v1161 = vsel %vm1151, %v1138, 0.0
  %1162 = vadd.xlane.f32.xlu0 %v1161
  %v1163 = vpop.xlane.xlu0 %1162
  %v1164 = vsel %vm1151, %v1139, 0.0
  %1165 = vadd.xlane.f32.xlu0 %v1164
  %v1166 = vpop.xlane.xlu0 %1165
  %v1167 = vsel %vm1151, %v1140, 0.0
  %1168 = vadd.xlane.f32.xlu0 %v1167
  %v1169 = vpop.xlane.xlu0 %1168
  %v1170 = vsel %vm1151, %v1141, 0.0
  %1171 = vadd.xlane.f32.xlu0 %v1170
  %v1172 = vpop.xlane.xlu0 %1171
  %v1173 = vsel %vm1151, %v1142, 0.0
  %1174 = vadd.xlane.f32.xlu0 %v1173
  %v1175 = vpop.xlane.xlu0 %1174
  %v1176 = vsel %vm1151, %v1143, 0.0
  %1177 = vadd.xlane.f32.xlu0 %v1176
  %v1178 = vpop.xlane.xlu0 %1177
  %v1179 = vsel %vm1151, %v1144, 0.0
  %1180 = vadd.xlane.f32.xlu0 %v1179
  %v1181 = vpop.xlane.xlu0 %1180
  %v1182 = vsel %vm1151, %v1145, 0.0
  %1183 = vadd.xlane.f32.xlu0 %v1182
  %v1184 = vpop.xlane.xlu0 %1183
  %v1185 = vsel %vm1151, %v1146, 0.0
  %1186 = vadd.xlane.f32.xlu0 %v1185
  %v1187 = vpop.xlane.xlu0 %1186
  %v1188 = vsel %vm1151, %v1147, 0.0
  %1189 = vadd.xlane.f32.xlu0 %v1188
  %v1190 = vpop.xlane.xlu0 %1189
  %v1191 = vsel %vm1151, %v1148, 0.0
  %1192 = vadd.xlane.f32.xlu0 %v1191
  %v1193 = vpop.xlane.xlu0 %1192
  %v1194 = vsel %vm1151, %v1149, 0.0
  %1195 = vadd.xlane.f32.xlu0 %v1194
  %v1196 = vpop.xlane.xlu0 %1195
  %v1197 = vsel %vm1151, %v1150, 0.0
  %1198 = vadd.xlane.f32.xlu0 %v1197
  %v1199 = vpop.xlane.xlu0 %1198
  %v1200 = vmul.f32 %v1119, %v930
  %v1201 = vmul.f32 %v1120, %v934
  %v1202 = vmul.f32 %v1121, %v940
  %v1203 = vmul.f32 %v1122, %v944
  %v1204 = vmul.f32 %v1123, %v950
  %v1205 = vmul.f32 %v1124, %v954
  %v1206 = vmul.f32 %v1125, %v960
  %v1207 = vmul.f32 %v1126, %v964
  %v1208 = vmul.f32 %v1127, %v970
  %v1209 = vmul.f32 %v1128, %v974
  %v1210 = vmul.f32 %v1129, %v980
  %v1211 = vmul.f32 %v1130, %v984
  %v1212 = vmul.f32 %v1131, %v990
  %v1213 = vmul.f32 %v1132, %v994
  %v1214 = vmul.f32 %v1133, %v1000
  %v1215 = vmul.f32 %v1134, %v1004
  %v1216 = vsel %vm1151, %v1200, 0.0
  %1217 = vadd.xlane.f32.xlu0 %v1216
  %v1218 = vpop.xlane.xlu0 %1217
  %v1219 = vsel %vm1151, %v1201, 0.0
  %1220 = vadd.xlane.f32.xlu0 %v1219
  %v1221 = vpop.xlane.xlu0 %1220
  %v1222 = vsel %vm1151, %v1202, 0.0
  %1223 = vadd.xlane.f32.xlu0 %v1222
  %v1224 = vpop.xlane.xlu0 %1223
  %v1225 = vsel %vm1151, %v1203, 0.0
  %1226 = vadd.xlane.f32.xlu0 %v1225
  %v1227 = vpop.xlane.xlu0 %1226
  %v1228 = vsel %vm1151, %v1204, 0.0
  %1229 = vadd.xlane.f32.xlu0 %v1228
  %v1230 = vpop.xlane.xlu0 %1229
  %v1231 = vsel %vm1151, %v1205, 0.0
  %1232 = vadd.xlane.f32.xlu0 %v1231
  %v1233 = vpop.xlane.xlu0 %1232
  %v1234 = vsel %vm1151, %v1206, 0.0
  %1235 = vadd.xlane.f32.xlu0 %v1234
  %v1236 = vpop.xlane.xlu0 %1235
  %v1237 = vsel %vm1151, %v1207, 0.0
  %1238 = vadd.xlane.f32.xlu0 %v1237
  %v1239 = vpop.xlane.xlu0 %1238
  %v1240 = vsel %vm1151, %v1208, 0.0
  %1241 = vadd.xlane.f32.xlu0 %v1240
  %v1242 = vpop.xlane.xlu0 %1241
  %v1243 = vsel %vm1151, %v1209, 0.0
  %1244 = vadd.xlane.f32.xlu0 %v1243
  %v1245 = vpop.xlane.xlu0 %1244
  %v1246 = vsel %vm1151, %v1210, 0.0
  %1247 = vadd.xlane.f32.xlu0 %v1246
  %v1248 = vpop.xlane.xlu0 %1247
  %v1249 = vsel %vm1151, %v1211, 0.0
  %1250 = vadd.xlane.f32.xlu0 %v1249
  %v1251 = vpop.xlane.xlu0 %1250
  %v1252 = vsel %vm1151, %v1212, 0.0
  %1253 = vadd.xlane.f32.xlu0 %v1252
  %v1254 = vpop.xlane.xlu0 %1253
  %v1255 = vsel %vm1151, %v1213, 0.0
  %1256 = vadd.xlane.f32.xlu0 %v1255
  %v1257 = vpop.xlane.xlu0 %1256
  %v1258 = vsel %vm1151, %v1214, 0.0
  %1259 = vadd.xlane.f32.xlu0 %v1258
  %v1260 = vpop.xlane.xlu0 %1259
  %v1261 = vsel %vm1151, %v1215, 0.0
  %1262 = vadd.xlane.f32.xlu0 %v1261
  %v1263 = vpop.xlane.xlu0 %1262
  %v1264 = vmul.f32 %v1119, %v1041
  %v1265 = vmul.f32 %v1120, %v1044
  %v1266 = vmul.f32 %v1121, %v1049
  %v1267 = vmul.f32 %v1122, %v1052
  %v1268 = vmul.f32 %v1123, %v1057
  %v1269 = vmul.f32 %v1124, %v1060
  %v1270 = vmul.f32 %v1125, %v1065
  %v1271 = vmul.f32 %v1126, %v1068
  %v1272 = vmul.f32 %v1127, %v1073
  %v1273 = vmul.f32 %v1128, %v1076
  %v1274 = vmul.f32 %v1129, %v1081
  %v1275 = vmul.f32 %v1130, %v1084
  %v1276 = vmul.f32 %v1131, %v1089
  %v1277 = vmul.f32 %v1132, %v1092
  %v1278 = vmul.f32 %v1133, %v1097
  %v1279 = vmul.f32 %v1134, %v1100
  %v1280 = vsel %vm1151, %v1264, 0.0
  %1281 = vadd.xlane.f32.xlu0 %v1280
  %v1282 = vpop.xlane.xlu0 %1281
  %v1283 = vsel %vm1151, %v1265, 0.0
  %1284 = vadd.xlane.f32.xlu0 %v1283
  %v1285 = vpop.xlane.xlu0 %1284
  %v1286 = vsel %vm1151, %v1266, 0.0
  %1287 = vadd.xlane.f32.xlu0 %v1286
  %v1288 = vpop.xlane.xlu0 %1287
  %v1289 = vsel %vm1151, %v1267, 0.0
  %1290 = vadd.xlane.f32.xlu0 %v1289
  %v1291 = vpop.xlane.xlu0 %1290
  %v1292 = vsel %vm1151, %v1268, 0.0
  %1293 = vadd.xlane.f32.xlu0 %v1292
  %v1294 = vpop.xlane.xlu0 %1293
  %v1295 = vsel %vm1151, %v1269, 0.0
  %1296 = vadd.xlane.f32.xlu0 %v1295
  %v1297 = vpop.xlane.xlu0 %1296
  %v1298 = vsel %vm1151, %v1270, 0.0
  %1299 = vadd.xlane.f32.xlu0 %v1298
  %v1300 = vpop.xlane.xlu0 %1299
  %v1301 = vsel %vm1151, %v1271, 0.0
  %1302 = vadd.xlane.f32.xlu0 %v1301
  %v1303 = vpop.xlane.xlu0 %1302
  %v1304 = vsel %vm1151, %v1272, 0.0
  %1305 = vadd.xlane.f32.xlu0 %v1304
  %v1306 = vpop.xlane.xlu0 %1305
  %v1307 = vsel %vm1151, %v1273, 0.0
  %1308 = vadd.xlane.f32.xlu0 %v1307
  %v1309 = vpop.xlane.xlu0 %1308
  %v1310 = vsel %vm1151, %v1274, 0.0
  %1311 = vadd.xlane.f32.xlu0 %v1310
  %v1312 = vpop.xlane.xlu0 %1311
  %v1313 = vsel %vm1151, %v1275, 0.0
  %1314 = vadd.xlane.f32.xlu0 %v1313
  %v1315 = vpop.xlane.xlu0 %1314
  %v1316 = vsel %vm1151, %v1276, 0.0
  %1317 = vadd.xlane.f32.xlu0 %v1316
  %v1318 = vpop.xlane.xlu0 %1317
  %v1319 = vsel %vm1151, %v1277, 0.0
  %1320 = vadd.xlane.f32.xlu0 %v1319
  %v1321 = vpop.xlane.xlu0 %1320
  %v1322 = vsel %vm1151, %v1278, 0.0
  %1323 = vadd.xlane.f32.xlu0 %v1322
  %v1324 = vpop.xlane.xlu0 %1323
  %v1325 = vsel %vm1151, %v1279, 0.0
  %1326 = vadd.xlane.f32.xlu0 %v1325
  %v1327 = vpop.xlane.xlu0 %1326
  %vm1328 = vcmask 7168
  %v1329 = vsel %vm1328, %v1154, %v1218
  %v1330 = vsel %vm1328, %v1157, %v1221
  %v1331 = vsel %vm1328, %v1160, %v1224
  %v1332 = vsel %vm1328, %v1163, %v1227
  %v1333 = vsel %vm1328, %v1166, %v1230
  %v1334 = vsel %vm1328, %v1169, %v1233
  %v1335 = vsel %vm1328, %v1172, %v1236
  %v1336 = vsel %vm1328, %v1175, %v1239
  %v1337 = vsel %vm1328, %v1178, %v1242
  %v1338 = vsel %vm1328, %v1181, %v1245
  %v1339 = vsel %vm1328, %v1184, %v1248
  %v1340 = vsel %vm1328, %v1187, %v1251
  %v1341 = vsel %vm1328, %v1190, %v1254
  %v1342 = vsel %vm1328, %v1193, %v1257
  %v1343 = vsel %vm1328, %v1196, %v1260
  %v1344 = vsel %vm1328, %v1199, %v1263
  %vm1345 = vcmask 15360
  %v1346 = vsel %vm1345, %v1329, %v1282
  %v1347 = vsel %vm1345, %v1330, %v1285
  %v1348 = vsel %vm1345, %v1331, %v1288
  %v1349 = vsel %vm1345, %v1332, %v1291
  %v1350 = vsel %vm1345, %v1333, %v1294
  %v1351 = vsel %vm1345, %v1334, %v1297
  %v1352 = vsel %vm1345, %v1335, %v1300
  %v1353 = vsel %vm1345, %v1336, %v1303
  %v1354 = vsel %vm1345, %v1337, %v1306
  %v1355 = vsel %vm1345, %v1338, %v1309
  %v1356 = vsel %vm1345, %v1339, %v1312
  %v1357 = vsel %vm1345, %v1340, %v1315
  %v1358 = vsel %vm1345, %v1341, %v1318
  %v1359 = vsel %vm1345, %v1342, %v1321
  %v1360 = vsel %vm1345, %v1343, %v1324
  %v1361 = vsel %vm1345, %v1344, %v1327
  %vm1362 = vcmask 23552
  %1363 = vst.msk [vmem:[%s6] sm:$0xff] %vm1362, %v1346
  %1364 = vst.msk [vmem:[%s6 + $0x8] sm:$0xff] %vm1362, %v1347
  %1365 = vst.msk [vmem:[%s6 + $0x10] sm:$0xff] %vm1362, %v1348
  %1366 = vst.msk [vmem:[%s6 + $0x18] sm:$0xff] %vm1362, %v1349
  %1367 = vst.msk [vmem:[%s6 + $0x20] sm:$0xff] %vm1362, %v1350
  %1368 = vst.msk [vmem:[%s6 + $0x28] sm:$0xff] %vm1362, %v1351
  %1369 = vst.msk [vmem:[%s6 + $0x30] sm:$0xff] %vm1362, %v1352
  %1370 = vst.msk [vmem:[%s6 + $0x38] sm:$0xff] %vm1362, %v1353
  %1371 = vst.msk [vmem:[%s6 + $0x40] sm:$0xff] %vm1362, %v1354
  %1372 = vst.msk [vmem:[%s6 + $0x48] sm:$0xff] %vm1362, %v1355
  %1373 = vst.msk [vmem:[%s6 + $0x50] sm:$0xff] %vm1362, %v1356
  %1374 = vst.msk [vmem:[%s6 + $0x58] sm:$0xff] %vm1362, %v1357
  %1375 = vst.msk [vmem:[%s6 + $0x60] sm:$0xff] %vm1362, %v1358
  %1376 = vst.msk [vmem:[%s6 + $0x68] sm:$0xff] %vm1362, %v1359
  %1377 = vst.msk [vmem:[%s6 + $0x70] sm:$0xff] %vm1362, %v1360
  %1378 = vst.msk [vmem:[%s6 + $0x78] sm:$0xff] %vm1362, %v1361
  // Predicated region
  $region26: #{_lambda_.3} parent=0 // pred_check
    _
  $region27: #{_lambda_.3} parent=0 // pred_check_branch
    %1380 = sbr.rel (0) target = $region29
  $region28: #{_lambda_.3} parent=0 // pred_region
    _
  $region29: #{_lambda_.3} parent=0 // pred_fallthru
    _
  // Predicated region
  $region30: #{_lambda_.3} parent=0 // pred_check
    _
  $region31: #{_lambda_.3} parent=0 // pred_check_branch
    %1382 = sbr.rel (0) target = $region33
  $region32: #{_lambda_.3} parent=0 // pred_region
    _
  $region33: #{_lambda_.3} parent=0 // pred_fallthru
    _

</llo_original>
